<compile_context>
chip_gen: v6e
topology: v6e:2x2x1
jax: 0.10.0
libtpu: 0.0.40
codegen_flags: <defaults>
</compile_context>

<pallas_src>
import math

import numpy as np
import jax
import jax.numpy as jnp
from jax.experimental import pallas as pl
from jax.experimental.pallas import tpu as pltpu

NHEROS = 113
NHPAD = 128           # hero axis padded to one full 128-lane tile
TEAM_SIZE = 5
N_BASIS_1TO2 = 5      # number of basis maps of the order-1 -> order-2 layer
LANE = 128


def _block_diag(a, b):
    za = jnp.zeros((a.shape[0], b.shape[1]), a.dtype)
    zb = jnp.zeros((b.shape[0], a.shape[1]), b.dtype)
    return jnp.concatenate(
        [jnp.concatenate([a, za], axis=1),
         jnp.concatenate([zb, b], axis=1)], axis=0)


# ---------------------------------------------------------------------------
# Canonical Eq1to2 basis (reference only; the kernel never materializes it).
# TODO(synk): the Eq1to2 / DeepSets sources were not included with the module;
# this uses the canonical Maron-et-al. 5-basis ops ('inf' normalization: the
# two summed bases divided by n) and a phi -> sum -> rho DeepSets
# (Linear+ReLU per element, sum over the set, Linear).  Confirm against the
# original main_mask_dota2.py definitions.
# ---------------------------------------------------------------------------
def _ops_1_to_2(x):
    """x: (B, D, n) -> (B, D, 5, n, n)."""
    B, D, n = x.shape
    eye = jnp.eye(n, dtype=x.dtype)
    s = x.sum(-1, keepdims=True)                                    # (B, D, 1)
    full = (B, D, n, n)
    op1 = x[..., :, None] * eye                                     # diag(v)
    op2 = jnp.broadcast_to(s, (B, D, n))[..., :, None] * eye / n    # diag(sum)/n
    op3 = jnp.broadcast_to(x[..., None, :], full)                   # v_j in row i
    op4 = jnp.broadcast_to(x[..., :, None], full)                   # v_i in col j
    op5 = jnp.broadcast_to(s[..., None], full) / n                  # sum/n everywhere
    return jnp.stack([op1, op2, op3, op4, op5], axis=2)


# ---------------------------------------------------------------------------
# Forward: one fused Pallas kernel, grid over the batch.
# ---------------------------------------------------------------------------
def eq1to2_set_forward(params, x1, x2):
    emb = params["embed"]
    D = emb.shape[1]
    S = params["coefs1"].shape[1]
    H = params["ds1_wp"].shape[1]
    C = params["fc_b"].shape[0]
    B, n = x1.shape
    P = n * n
    S2, H2 = 2 * S, 2 * H
    f32, bf16 = jnp.float32, jnp.bfloat16

    # ---- constant operands (weight restacking only; no activation work) ----
    tpad = jnp.zeros((NHPAD, D), f32).at[:NHEROS].set(emb)
    tblk = _block_diag(tpad, tpad).astype(bf16)                        # (2*128, 2D)
    sumsel = _block_diag(jnp.ones((1, n), f32),
                         jnp.ones((1, n), f32)).astype(bf16)           # (2, 2n)

    def basis_blk(k, scale=1.0):
        return _block_diag(params["coefs1"][:, :, k],
                           params["coefs2"][:, :, k]) * scale          # (2D, 2S)

    # Column order must match the kernel's slicing:
    # [v_i | v_j | diag(v) | diag(sum)/n | sum/n]  (ops 4, 3, 1, 2, 5).
    wallcat = jnp.concatenate(
        [basis_blk(3), basis_blk(2), basis_blk(0),
         basis_blk(1, 1.0 / n), basis_blk(4, 1.0 / n)],
        axis=1).astype(bf16)                                           # (2D, 5*2S)

    # Exact 0/1 position selector: O(n^2) rows, independent of the batch.
    bigsel = np.zeros((2 * P, 6 * n + 4), np.float32)
    for t in range(2):
        for i in range(n):
            for j in range(n):
                r = t * P + i * n + j
                bigsel[r, t * n + i] = 1.0                  # v_i          (always)
                bigsel[r, 2 * n + t * n + j] = 1.0          # v_j          (always)
                if i == j:
                    bigsel[r, 4 * n + t * n + i] = 1.0      # diag(v_i)    (diag only)
                    bigsel[r, 6 * n + t] = 1.0              # diag(sum)/n  (diag only)
                bigsel[r, 6 * n + 2 + t] = 1.0              # sum/n        (always)
    bigsel = jnp.asarray(bigsel, bf16)                                  # (2P, 6n+4)

    eqbias = jnp.concatenate([params["eq_bias1"], params["eq_bias2"]])[None, :]  # (1,2S)
    wphi = _block_diag(params["ds1_wp"], params["ds2_wp"]).astype(bf16)          # (2S,2H)
    bphi = jnp.concatenate([params["ds1_bp"], params["ds2_bp"]])[None, :]        # (1,2H)
    poolsel = _block_diag(jnp.ones((1, P), f32),
                          jnp.ones((1, P), f32)).astype(bf16)                    # (2,2P)
    wrho = _block_diag(params["ds1_wr"], params["ds2_wr"]).astype(bf16)          # (2H,2S)
    brho = jnp.concatenate([params["ds1_br"], params["ds2_br"]])[None, :]        # (1,2S)
    mask = _block_diag(jnp.ones((1, S), f32), jnp.ones((1, S), f32))             # (2,2S)
    wfc = jnp.zeros((S2, LANE), f32).at[:, :C].set(params["fc_w"]).astype(bf16)  # (2S,128)
    bfc = jnp.zeros((1, LANE), f32).at[0, :C].set(params["fc_b"])                # (1,128)

    x_ids = jnp.concatenate([x1, x2], axis=1).astype(jnp.int32)                  # (B, 2n)

    def kernel(x_ref, tblk_ref, sumsel_ref, wall_ref, bigsel_ref, eqb_ref,
               wphi_ref, bphi_ref, pool_ref, wrho_ref, brho_ref, mask_ref,
               wfc_ref, bfc_ref, out_ref):
        b = pl.program_id(0)

        def mm(a, w):
            return jnp.dot(a, w, preferred_element_type=jnp.float32)

        # -- embedding gather + ReLU, both teams, via one one-hot MXU matmul.
        #    Team 2's one-hot is offset by 128, so with the block-diagonal
        #    table team-1 rows land in channels [0,D) and team-2 rows in
        #    [D,2D); downstream block-diagonal weights keep teams separated
        #    while every matmul processes both teams at once.
        lane = jax.lax.broadcasted_iota(jnp.int32, (1, 2 * NHPAD), 1)
        rows = []
        for t in range(2):
            for h in range(n):
                hero = x_ref[b, t * n + h] + t * NHPAD
                rows.append((lane == hero).astype(jnp.float32))
        onehot = jnp.concatenate(rows, axis=0).astype(jnp.bfloat16)   # (2n, 256)
        e = jnp.maximum(mm(onehot, tblk_ref[...]), 0.0)               # (2n, 2D) f32
        ebar = mm(sumsel_ref[...], e.astype(jnp.bfloat16))            # (2, 2D) team sums
        eaug = jnp.concatenate([e, ebar], axis=0).astype(jnp.bfloat16)  # (2n+2, 2D)

        # -- Eq1to2: one fused coefficient matmul for all 5 bases / both
        #    teams, then one 0/1 selector matmul scattering the compact
        #    contractions to the n*n pair positions.
        aa = mm(eaug, wall_ref[...])                                  # (2n+2, 5*2S)
        n2 = 2 * n
        m = jnp.concatenate(
            [aa[:n2, 0 * S2:1 * S2],          # v_i
             aa[:n2, 1 * S2:2 * S2],          # v_j
             aa[:n2, 2 * S2:3 * S2],          # diag(v_i)
             aa[n2:, 3 * S2:4 * S2],          # diag(sum)/n
             aa[n2:, 4 * S2:5 * S2]],         # sum/n
            axis=0)                                                   # (6n+4, 2S) f32
        base = jnp.maximum(mm(bigsel_ref[...], m.astype(jnp.bfloat16))
                           + eqb_ref[...], 0.0)                       # (2P, 2S)

        # -- DeepSets: phi -> sum over the n*n positions -> rho (block-diag).
        z = jnp.maximum(mm(base.astype(jnp.bfloat16), wphi_ref[...])
                        + bphi_ref[...], 0.0)                         # (2P, 2H)
        pooled = mm(pool_ref[...], z.astype(jnp.bfloat16))            # (2, 2H)
        hset = jnp.maximum(mm(pooled.astype(jnp.bfloat16), wrho_ref[...])
                           + brho_ref[...], 0.0)                      # (2, 2S)

        # -- fc_out(hstack([set1, set2])); the mask kills the constant
        #    cross-team garbage the shared broadcast biases put in the unused
        #    halves.  Lane-dense (1,128) result, stored as a full (8,128) tile.
        # TODO(synk): F.dropout(team_embed, training=self.training) is
        # identity at inference (training=False); no dropout applied here.
        logits = mm((hset * mask_ref[...]).astype(jnp.bfloat16), wfc_ref[...])  # (2,128)
        result = logits[0:1, :] + logits[1:2, :] + bfc_ref[...]       # (1, 128)
        out_ref[...] = jnp.broadcast_to(result, out_ref.shape)

    def const(shape):
        nd = len(shape)
        return pl.BlockSpec(shape, lambda i, xs, _nd=nd: (0,) * _nd)

    out = pl.pallas_call(
        kernel,
        out_shape=jax.ShapeDtypeStruct((B * 8, LANE), jnp.float32),
        grid_spec=pltpu.PrefetchScalarGridSpec(
            num_scalar_prefetch=1,
            grid=(B,),
            in_specs=[
                const(tblk.shape), const(sumsel.shape), const(wallcat.shape),
                const(bigsel.shape), const(eqbias.shape),
                const(wphi.shape), const(bphi.shape), const(poolsel.shape),
                const(wrho.shape), const(brho.shape), const(mask.shape),
                const(wfc.shape), const(bfc.shape),
            ],
            out_specs=pl.BlockSpec((8, LANE), lambda i, xs: (i, 0)),
        ),
        compiler_params=pltpu.CompilerParams(dimension_semantics=("parallel",)),
    )(x_ids, tblk, sumsel, wallcat, bigsel, eqbias,
      wphi, bphi, poolsel, wrho, brho, mask, wfc, bfc)

    return out.reshape(B, 8, LANE)[:, 0, :C]


# ---------------------------------------------------------------------------
# Pure-JAX reference (mirrors the PyTorch forward) for validation.
# ---------------------------------------------------------------------------
def eq1to2_set_reference(params, x1, x2):
    def emb(x):
        return jax.nn.relu(params["embed"][x]).transpose(0, 2, 1)   # (B, D, n)

    def eq1to2(x, coefs, bias):
        ops = _ops_1_to_2(x)                                        # (B, D, 5, n, n)
        return jnp.einsum('dsk,bdkij->bsij', coefs, ops) + bias[None, :, None, None]

    def deepsets(x, wp, bp, wr, br):                                # x: (B, P, S)
        h = jax.nn.relu(x @ wp + bp)
        return h.sum(axis=1) @ wr + br

    e1, e2 = emb(x1), emb(x2)
    p1 = jax.nn.relu(eq1to2(e1, params["coefs1"], params["eq_bias1"]))
    p2 = jax.nn.relu(eq1to2(e2, params["coefs2"], params["eq_bias2"]))
    B, S = p1.shape[0], p1.shape[1]
    s1 = jax.nn.relu(deepsets(p1.reshape(B, S, -1).transpose(0, 2, 1),
                              params["ds1_wp"], params["ds1_bp"],
                              params["ds1_wr"], params["ds1_br"]))
    s2 = jax.nn.relu(deepsets(p2.reshape(B, S, -1).transpose(0, 2, 1),
                              params["ds2_wp"], params["ds2_bp"],
                              params["ds2_wr"], params["ds2_br"]))
    team = jnp.concatenate([s1, s2], axis=-1)
    return team @ params["fc_w"] + params["fc_b"]


def init_params(key, embed_dim, hid_dim, num_classes=2):
    D, S = embed_dim, hid_dim
    ks = jax.random.split(key, 16)
    coef_scale = math.sqrt(2.0 / (D + S + N_BASIS_1TO2))

    def lin(k, fan_in, shape):
        return jax.random.uniform(k, shape, jnp.float32, -1.0, 1.0) / math.sqrt(fan_in)

    return {
        "embed": jax.random.normal(ks[0], (NHEROS, D), jnp.float32),
        "coefs1": jax.random.normal(ks[1], (D, S, N_BASIS_1TO2), jnp.float32) * coef_scale,
        "coefs2": jax.random.normal(ks[2], (D, S, N_BASIS_1TO2), jnp.float32) * coef_scale,
        "eq_bias1": jax.random.normal(ks[3], (S,), jnp.float32) * 0.01,
        "eq_bias2": jax.random.normal(ks[4], (S,), jnp.float32) * 0.01,
        "ds1_wp": lin(ks[5], S, (S, S)), "ds1_bp": lin(ks[6], S, (S,)),
        "ds1_wr": lin(ks[7], S, (S, S)), "ds1_br": lin(ks[8], S, (S,)),
        "ds2_wp": lin(ks[9], S, (S, S)), "ds2_bp": lin(ks[10], S, (S,)),
        "ds2_wr": lin(ks[11], S, (S, S)), "ds2_br": lin(ks[12], S, (S,)),
        "fc_w": lin(ks[13], 2 * S, (2 * S, num_classes)),
        "fc_b": lin(ks[14], 2 * S, (num_classes,)),
    }


if __name__ == "__main__":
    embed_dim, hid_dim, num_classes, batch = 16, 32, 2, 2

    key = jax.random.PRNGKey(0)
    kp, kx1, kx2 = jax.random.split(key, 3)
    params = init_params(kp, embed_dim, hid_dim, num_classes)
    x1 = jax.random.randint(kx1, (batch, TEAM_SIZE), 0, NHEROS, dtype=jnp.int32)
    x2 = jax.random.randint(kx2, (batch, TEAM_SIZE), 0, NHEROS, dtype=jnp.int32)

    out = jax.jit(eq1to2_set_forward)(params, x1, x2)
    out = jax.block_until_ready(out)

    ref = eq1to2_set_reference(params, x1, x2)
    assert out.shape == (batch, num_classes), out.shape
    # bf16 MXU operands vs f32 reference -> slightly looser tolerance than f32.
    assert jnp.allclose(out, ref, rtol=3e-2, atol=3e-2), (out, ref)
    print("KERNEL_OK")
</pallas_src>

<mosaic_0001>
module attributes {stable_mosaic.version = 11 : i64} {
  func.func @kernel(%arg0: i32, %arg1: memref<2x10xi32, #tpu.memory_space<smem>>, %arg2: memref<256x32xbf16, #tpu.memory_space<vmem>>, %arg3: memref<2x10xbf16, #tpu.memory_space<vmem>>, %arg4: memref<32x320xbf16, #tpu.memory_space<vmem>>, %arg5: memref<50x34xbf16, #tpu.memory_space<vmem>>, %arg6: memref<1x64xf32, #tpu.memory_space<vmem>>, %arg7: memref<64x64xbf16, #tpu.memory_space<vmem>>, %arg8: memref<1x64xf32, #tpu.memory_space<vmem>>, %arg9: memref<2x50xbf16, #tpu.memory_space<vmem>>, %arg10: memref<64x64xbf16, #tpu.memory_space<vmem>>, %arg11: memref<1x64xf32, #tpu.memory_space<vmem>>, %arg12: memref<2x64xf32, #tpu.memory_space<vmem>>, %arg13: memref<64x128xbf16, #tpu.memory_space<vmem>>, %arg14: memref<1x128xf32, #tpu.memory_space<vmem>>, %arg15: memref<8x128xf32, #tpu.memory_space<vmem>>) attributes {dimension_semantics = [#tpu.dimension_semantics<parallel>], iteration_bounds = array<i64: 2>, scalar_prefetch = 1 : i64, scratch_operands = 0 : i64, tpu.core_type = #tpu.core_type<tc>, window_params = [{pipeline_mode = #tpu.pipeline_mode<synchronous>, transform_indices = @transform_0, window_bounds = array<i64: 256, 32>}, {pipeline_mode = #tpu.pipeline_mode<synchronous>, transform_indices = @transform_1, window_bounds = array<i64: 2, 10>}, {pipeline_mode = #tpu.pipeline_mode<synchronous>, transform_indices = @transform_2, window_bounds = array<i64: 32, 320>}, {pipeline_mode = #tpu.pipeline_mode<synchronous>, transform_indices = @transform_3, window_bounds = array<i64: 50, 34>}, {pipeline_mode = #tpu.pipeline_mode<synchronous>, transform_indices = @transform_4, window_bounds = array<i64: 1, 64>}, {pipeline_mode = #tpu.pipeline_mode<synchronous>, transform_indices = @transform_5, window_bounds = array<i64: 64, 64>}, {pipeline_mode = #tpu.pipeline_mode<synchronous>, transform_indices = @transform_6, window_bounds = array<i64: 1, 64>}, {pipeline_mode = #tpu.pipeline_mode<synchronous>, transform_indices = @transform_7, window_bounds = array<i64: 2, 50>}, {pipeline_mode = #tpu.pipeline_mode<synchronous>, transform_indices = @transform_8, window_bounds = array<i64: 64, 64>}, {pipeline_mode = #tpu.pipeline_mode<synchronous>, transform_indices = @transform_9, window_bounds = array<i64: 1, 64>}, {pipeline_mode = #tpu.pipeline_mode<synchronous>, transform_indices = @transform_10, window_bounds = array<i64: 2, 64>}, {pipeline_mode = #tpu.pipeline_mode<synchronous>, transform_indices = @transform_11, window_bounds = array<i64: 64, 128>}, {pipeline_mode = #tpu.pipeline_mode<synchronous>, transform_indices = @transform_12, window_bounds = array<i64: 1, 128>}, {transform_indices = @transform_13, window_bounds = array<i64: 8, 128>}]} {
    %0 = tpu.iota {dimensions = array<i32: 1>} : vector<1x256xi32>
    %1 = arith.index_cast %arg0 : i32 to index
    %c0 = arith.constant 0 : index
    %2 = memref.load %arg1[%1, %c0] : memref<2x10xi32, #tpu.memory_space<smem>>
    %c0_i32 = arith.constant 0 : i32
    %3 = arith.addi %2, %c0_i32 : i32
    %4 = vector.broadcast %3 : i32 to vector<1x256xi32>
    %5 = arith.cmpi eq, %0, %4 : vector<1x256xi32>
    %6 = arith.extui %5 : vector<1x256xi1> to vector<1x256xi32>
    %7 = arith.sitofp %6 : vector<1x256xi32> to vector<1x256xf32>
    %8 = arith.index_cast %arg0 : i32 to index
    %c1 = arith.constant 1 : index
    %9 = memref.load %arg1[%8, %c1] : memref<2x10xi32, #tpu.memory_space<smem>>
    %c0_i32_0 = arith.constant 0 : i32
    %10 = arith.addi %9, %c0_i32_0 : i32
    %11 = vector.broadcast %10 : i32 to vector<1x256xi32>
    %12 = arith.cmpi eq, %0, %11 : vector<1x256xi32>
    %13 = arith.extui %12 : vector<1x256xi1> to vector<1x256xi32>
    %14 = arith.sitofp %13 : vector<1x256xi32> to vector<1x256xf32>
    %15 = arith.index_cast %arg0 : i32 to index
    %c2 = arith.constant 2 : index
    %16 = memref.load %arg1[%15, %c2] : memref<2x10xi32, #tpu.memory_space<smem>>
    %c0_i32_1 = arith.constant 0 : i32
    %17 = arith.addi %16, %c0_i32_1 : i32
    %18 = vector.broadcast %17 : i32 to vector<1x256xi32>
    %19 = arith.cmpi eq, %0, %18 : vector<1x256xi32>
    %20 = arith.extui %19 : vector<1x256xi1> to vector<1x256xi32>
    %21 = arith.sitofp %20 : vector<1x256xi32> to vector<1x256xf32>
    %22 = arith.index_cast %arg0 : i32 to index
    %c3 = arith.constant 3 : index
    %23 = memref.load %arg1[%22, %c3] : memref<2x10xi32, #tpu.memory_space<smem>>
    %c0_i32_2 = arith.constant 0 : i32
    %24 = arith.addi %23, %c0_i32_2 : i32
    %25 = vector.broadcast %24 : i32 to vector<1x256xi32>
    %26 = arith.cmpi eq, %0, %25 : vector<1x256xi32>
    %27 = arith.extui %26 : vector<1x256xi1> to vector<1x256xi32>
    %28 = arith.sitofp %27 : vector<1x256xi32> to vector<1x256xf32>
    %29 = arith.index_cast %arg0 : i32 to index
    %c4 = arith.constant 4 : index
    %30 = memref.load %arg1[%29, %c4] : memref<2x10xi32, #tpu.memory_space<smem>>
    %c0_i32_3 = arith.constant 0 : i32
    %31 = arith.addi %30, %c0_i32_3 : i32
    %32 = vector.broadcast %31 : i32 to vector<1x256xi32>
    %33 = arith.cmpi eq, %0, %32 : vector<1x256xi32>
    %34 = arith.extui %33 : vector<1x256xi1> to vector<1x256xi32>
    %35 = arith.sitofp %34 : vector<1x256xi32> to vector<1x256xf32>
    %36 = arith.index_cast %arg0 : i32 to index
    %c5 = arith.constant 5 : index
    %37 = memref.load %arg1[%36, %c5] : memref<2x10xi32, #tpu.memory_space<smem>>
    %c128_i32 = arith.constant 128 : i32
    %38 = arith.addi %37, %c128_i32 : i32
    %39 = vector.broadcast %38 : i32 to vector<1x256xi32>
    %40 = arith.cmpi eq, %0, %39 : vector<1x256xi32>
    %41 = arith.extui %40 : vector<1x256xi1> to vector<1x256xi32>
    %42 = arith.sitofp %41 : vector<1x256xi32> to vector<1x256xf32>
    %43 = arith.index_cast %arg0 : i32 to index
    %c6 = arith.constant 6 : index
    %44 = memref.load %arg1[%43, %c6] : memref<2x10xi32, #tpu.memory_space<smem>>
    %c128_i32_4 = arith.constant 128 : i32
    %45 = arith.addi %44, %c128_i32_4 : i32
    %46 = vector.broadcast %45 : i32 to vector<1x256xi32>
    %47 = arith.cmpi eq, %0, %46 : vector<1x256xi32>
    %48 = arith.extui %47 : vector<1x256xi1> to vector<1x256xi32>
    %49 = arith.sitofp %48 : vector<1x256xi32> to vector<1x256xf32>
    %50 = arith.index_cast %arg0 : i32 to index
    %c7 = arith.constant 7 : index
    %51 = memref.load %arg1[%50, %c7] : memref<2x10xi32, #tpu.memory_space<smem>>
    %c128_i32_5 = arith.constant 128 : i32
    %52 = arith.addi %51, %c128_i32_5 : i32
    %53 = vector.broadcast %52 : i32 to vector<1x256xi32>
    %54 = arith.cmpi eq, %0, %53 : vector<1x256xi32>
    %55 = arith.extui %54 : vector<1x256xi1> to vector<1x256xi32>
    %56 = arith.sitofp %55 : vector<1x256xi32> to vector<1x256xf32>
    %57 = arith.index_cast %arg0 : i32 to index
    %c8 = arith.constant 8 : index
    %58 = memref.load %arg1[%57, %c8] : memref<2x10xi32, #tpu.memory_space<smem>>
    %c128_i32_6 = arith.constant 128 : i32
    %59 = arith.addi %58, %c128_i32_6 : i32
    %60 = vector.broadcast %59 : i32 to vector<1x256xi32>
    %61 = arith.cmpi eq, %0, %60 : vector<1x256xi32>
    %62 = arith.extui %61 : vector<1x256xi1> to vector<1x256xi32>
    %63 = arith.sitofp %62 : vector<1x256xi32> to vector<1x256xf32>
    %64 = arith.index_cast %arg0 : i32 to index
    %c9 = arith.constant 9 : index
    %65 = memref.load %arg1[%64, %c9] : memref<2x10xi32, #tpu.memory_space<smem>>
    %c128_i32_7 = arith.constant 128 : i32
    %66 = arith.addi %65, %c128_i32_7 : i32
    %67 = vector.broadcast %66 : i32 to vector<1x256xi32>
    %68 = arith.cmpi eq, %0, %67 : vector<1x256xi32>
    %69 = arith.extui %68 : vector<1x256xi1> to vector<1x256xi32>
    %70 = arith.sitofp %69 : vector<1x256xi32> to vector<1x256xf32>
    %71 = tpu.concatenate %7, %14, %21, %28, %35, %42, %49, %56, %63, %70 in 0 : vector<1x256xf32>, vector<1x256xf32>, vector<1x256xf32>, vector<1x256xf32>, vector<1x256xf32>, vector<1x256xf32>, vector<1x256xf32>, vector<1x256xf32>, vector<1x256xf32>, vector<1x256xf32> -> vector<10x256xf32>
    %72 = arith.truncf %71 : vector<10x256xf32> to vector<10x256xbf16>
    %c0_8 = arith.constant 0 : index
    %c0_9 = arith.constant 0 : index
    %73 = vector.load %arg2[%c0_8, %c0_9] : memref<256x32xbf16, #tpu.memory_space<vmem>>, vector<256x32xbf16>
    %cst = arith.constant dense<0.000000e+00> : vector<10x32xf32>
    %74 = tpu.matmul %72, %73, %cst {dimension_numbers = #tpu.dot_dimension_numbers<[1], [0], [0], [1], [0, 0, 1, 1], [], []>} : vector<10x256xbf16>, vector<256x32xbf16>, vector<10x32xf32> -> vector<10x32xf32>
    %cst_10 = arith.constant 0.000000e+00 : f32
    %75 = vector.broadcast %cst_10 : f32 to vector<10x32xf32>
    %76 = arith.maximumf %74, %75 : vector<10x32xf32>
    %c0_11 = arith.constant 0 : index
    %c0_12 = arith.constant 0 : index
    %77 = vector.load %arg3[%c0_11, %c0_12] : memref<2x10xbf16, #tpu.memory_space<vmem>>, vector<2x10xbf16>
    %78 = arith.truncf %76 : vector<10x32xf32> to vector<10x32xbf16>
    %cst_13 = arith.constant dense<0.000000e+00> : vector<2x32xf32>
    %79 = tpu.matmul %77, %78, %cst_13 {dimension_numbers = #tpu.dot_dimension_numbers<[1], [0], [0], [1], [0, 0, 1, 1], [], []>} : vector<2x10xbf16>, vector<10x32xbf16>, vector<2x32xf32> -> vector<2x32xf32>
    %80 = tpu.concatenate %76, %79 in 0 : vector<10x32xf32>, vector<2x32xf32> -> vector<12x32xf32>
    %81 = arith.truncf %80 : vector<12x32xf32> to vector<12x32xbf16>
    %c0_14 = arith.constant 0 : index
    %c0_15 = arith.constant 0 : index
    %82 = vector.load %arg4[%c0_14, %c0_15] : memref<32x320xbf16, #tpu.memory_space<vmem>>, vector<32x320xbf16>
    %cst_16 = arith.constant dense<0.000000e+00> : vector<12x320xf32>
    %83 = tpu.matmul %81, %82, %cst_16 {dimension_numbers = #tpu.dot_dimension_numbers<[1], [0], [0], [1], [0, 0, 1, 1], [], []>} : vector<12x32xbf16>, vector<32x320xbf16>, vector<12x320xf32> -> vector<12x320xf32>
    %84 = vector.extract_strided_slice %83 {offsets = [0, 0], sizes = [10, 64], strides = [1, 1]} : vector<12x320xf32> to vector<10x64xf32>
    %85 = vector.extract_strided_slice %83 {offsets = [0, 64], sizes = [10, 64], strides = [1, 1]} : vector<12x320xf32> to vector<10x64xf32>
    %86 = vector.extract_strided_slice %83 {offsets = [0, 128], sizes = [10, 64], strides = [1, 1]} : vector<12x320xf32> to vector<10x64xf32>
    %87 = vector.extract_strided_slice %83 {offsets = [10, 192], sizes = [2, 64], strides = [1, 1]} : vector<12x320xf32> to vector<2x64xf32>
    %88 = vector.extract_strided_slice %83 {offsets = [10, 256], sizes = [2, 64], strides = [1, 1]} : vector<12x320xf32> to vector<2x64xf32>
    %89 = tpu.concatenate %84, %85, %86, %87, %88 in 0 : vector<10x64xf32>, vector<10x64xf32>, vector<10x64xf32>, vector<2x64xf32>, vector<2x64xf32> -> vector<34x64xf32>
    %c0_17 = arith.constant 0 : index
    %c0_18 = arith.constant 0 : index
    %90 = vector.load %arg5[%c0_17, %c0_18] : memref<50x34xbf16, #tpu.memory_space<vmem>>, vector<50x34xbf16>
    %91 = arith.truncf %89 : vector<34x64xf32> to vector<34x64xbf16>
    %cst_19 = arith.constant dense<0.000000e+00> : vector<50x64xf32>
    %92 = tpu.matmul %90, %91, %cst_19 {dimension_numbers = #tpu.dot_dimension_numbers<[1], [0], [0], [1], [0, 0, 1, 1], [], []>} : vector<50x34xbf16>, vector<34x64xbf16>, vector<50x64xf32> -> vector<50x64xf32>
    %c0_20 = arith.constant 0 : index
    %c0_21 = arith.constant 0 : index
    %93 = vector.load %arg6[%c0_20, %c0_21] : memref<1x64xf32, #tpu.memory_space<vmem>>, vector<1x64xf32>
    %94 = vector.broadcast %93 : vector<1x64xf32> to vector<50x64xf32>
    %95 = arith.addf %92, %94 : vector<50x64xf32>
    %cst_22 = arith.constant 0.000000e+00 : f32
    %96 = vector.broadcast %cst_22 : f32 to vector<50x64xf32>
    %97 = arith.maximumf %95, %96 : vector<50x64xf32>
    %98 = arith.truncf %97 : vector<50x64xf32> to vector<50x64xbf16>
    %c0_23 = arith.constant 0 : index
    %c0_24 = arith.constant 0 : index
    %99 = vector.load %arg7[%c0_23, %c0_24] : memref<64x64xbf16, #tpu.memory_space<vmem>>, vector<64x64xbf16>
    %cst_25 = arith.constant dense<0.000000e+00> : vector<50x64xf32>
    %100 = tpu.matmul %98, %99, %cst_25 {dimension_numbers = #tpu.dot_dimension_numbers<[1], [0], [0], [1], [0, 0, 1, 1], [], []>} : vector<50x64xbf16>, vector<64x64xbf16>, vector<50x64xf32> -> vector<50x64xf32>
    %c0_26 = arith.constant 0 : index
    %c0_27 = arith.constant 0 : index
    %101 = vector.load %arg8[%c0_26, %c0_27] : memref<1x64xf32, #tpu.memory_space<vmem>>, vector<1x64xf32>
    %102 = vector.broadcast %101 : vector<1x64xf32> to vector<50x64xf32>
    %103 = arith.addf %100, %102 : vector<50x64xf32>
    %cst_28 = arith.constant 0.000000e+00 : f32
    %104 = vector.broadcast %cst_28 : f32 to vector<50x64xf32>
    %105 = arith.maximumf %103, %104 : vector<50x64xf32>
    %c0_29 = arith.constant 0 : index
    %c0_30 = arith.constant 0 : index
    %106 = vector.load %arg9[%c0_29, %c0_30] : memref<2x50xbf16, #tpu.memory_space<vmem>>, vector<2x50xbf16>
    %107 = arith.truncf %105 : vector<50x64xf32> to vector<50x64xbf16>
    %cst_31 = arith.constant dense<0.000000e+00> : vector<2x64xf32>
    %108 = tpu.matmul %106, %107, %cst_31 {dimension_numbers = #tpu.dot_dimension_numbers<[1], [0], [0], [1], [0, 0, 1, 1], [], []>} : vector<2x50xbf16>, vector<50x64xbf16>, vector<2x64xf32> -> vector<2x64xf32>
    %109 = arith.truncf %108 : vector<2x64xf32> to vector<2x64xbf16>
    %c0_32 = arith.constant 0 : index
    %c0_33 = arith.constant 0 : index
    %110 = vector.load %arg10[%c0_32, %c0_33] : memref<64x64xbf16, #tpu.memory_space<vmem>>, vector<64x64xbf16>
    %cst_34 = arith.constant dense<0.000000e+00> : vector<2x64xf32>
    %111 = tpu.matmul %109, %110, %cst_34 {dimension_numbers = #tpu.dot_dimension_numbers<[1], [0], [0], [1], [0, 0, 1, 1], [], []>} : vector<2x64xbf16>, vector<64x64xbf16>, vector<2x64xf32> -> vector<2x64xf32>
    %c0_35 = arith.constant 0 : index
    %c0_36 = arith.constant 0 : index
    %112 = vector.load %arg11[%c0_35, %c0_36] : memref<1x64xf32, #tpu.memory_space<vmem>>, vector<1x64xf32>
    %113 = vector.broadcast %112 : vector<1x64xf32> to vector<2x64xf32>
    %114 = arith.addf %111, %113 : vector<2x64xf32>
    %cst_37 = arith.constant 0.000000e+00 : f32
    %115 = vector.broadcast %cst_37 : f32 to vector<2x64xf32>
    %116 = arith.maximumf %114, %115 : vector<2x64xf32>
    %c0_38 = arith.constant 0 : index
    %c0_39 = arith.constant 0 : index
    %117 = vector.load %arg12[%c0_38, %c0_39] : memref<2x64xf32, #tpu.memory_space<vmem>>, vector<2x64xf32>
    %118 = arith.mulf %116, %117 : vector<2x64xf32>
    %119 = arith.truncf %118 : vector<2x64xf32> to vector<2x64xbf16>
    %c0_40 = arith.constant 0 : index
    %c0_41 = arith.constant 0 : index
    %120 = vector.load %arg13[%c0_40, %c0_41] : memref<64x128xbf16, #tpu.memory_space<vmem>>, vector<64x128xbf16>
    %cst_42 = arith.constant dense<0.000000e+00> : vector<2x128xf32>
    %121 = tpu.matmul %119, %120, %cst_42 {dimension_numbers = #tpu.dot_dimension_numbers<[1], [0], [0], [1], [0, 0, 1, 1], [], []>} : vector<2x64xbf16>, vector<64x128xbf16>, vector<2x128xf32> -> vector<2x128xf32>
    %122 = vector.extract_strided_slice %121 {offsets = [0, 0], sizes = [1, 128], strides = [1, 1]} : vector<2x128xf32> to vector<1x128xf32>
    %123 = vector.extract_strided_slice %121 {offsets = [1, 0], sizes = [1, 128], strides = [1, 1]} : vector<2x128xf32> to vector<1x128xf32>
    %124 = arith.addf %122, %123 : vector<1x128xf32>
    %c0_43 = arith.constant 0 : index
    %c0_44 = arith.constant 0 : index
    %125 = vector.load %arg14[%c0_43, %c0_44] : memref<1x128xf32, #tpu.memory_space<vmem>>, vector<1x128xf32>
    %126 = arith.addf %124, %125 : vector<1x128xf32>
    %127 = vector.shape_cast %126 : vector<1x128xf32> to vector<1x128xf32>
    %128 = vector.broadcast %127 : vector<1x128xf32> to vector<8x128xf32>
    %c0_45 = arith.constant 0 : index
    %c0_46 = arith.constant 0 : index
    %129 = vector.load %arg15[%c0_45, %c0_46] : memref<8x128xf32, #tpu.memory_space<vmem>>, vector<8x128xf32>
    tpu.vector_store %arg15[%c0_45, %c0_46], %128 {strides = array<i32>} : memref<8x128xf32, #tpu.memory_space<vmem>>, vector<8x128xf32>,
    return
  }
  func.func @transform_0(%arg0: i32, %arg1: memref<2x10xi32, #tpu.memory_space<smem>>) -> (i32, i32) {
    %c0_i32 = arith.constant 0 : i32
    %c0_i32_0 = arith.constant 0 : i32
    %c0_i32_1 = arith.constant 0 : i32
    return %c0_i32, %c0_i32_0 : i32, i32
  }
  func.func @transform_1(%arg0: i32, %arg1: memref<2x10xi32, #tpu.memory_space<smem>>) -> (i32, i32) {
    %c0_i32 = arith.constant 0 : i32
    %c0_i32_0 = arith.constant 0 : i32
    %c0_i32_1 = arith.constant 0 : i32
    return %c0_i32, %c0_i32_0 : i32, i32
  }
  func.func @transform_2(%arg0: i32, %arg1: memref<2x10xi32, #tpu.memory_space<smem>>) -> (i32, i32) {
    %c0_i32 = arith.constant 0 : i32
    %c0_i32_0 = arith.constant 0 : i32
    %c0_i32_1 = arith.constant 0 : i32
    return %c0_i32, %c0_i32_0 : i32, i32
  }
  func.func @transform_3(%arg0: i32, %arg1: memref<2x10xi32, #tpu.memory_space<smem>>) -> (i32, i32) {
    %c0_i32 = arith.constant 0 : i32
    %c0_i32_0 = arith.constant 0 : i32
    %c0_i32_1 = arith.constant 0 : i32
    return %c0_i32, %c0_i32_0 : i32, i32
  }
  func.func @transform_4(%arg0: i32, %arg1: memref<2x10xi32, #tpu.memory_space<smem>>) -> (i32, i32) {
    %c0_i32 = arith.constant 0 : i32
    %c0_i32_0 = arith.constant 0 : i32
    %c0_i32_1 = arith.constant 0 : i32
    return %c0_i32, %c0_i32_0 : i32, i32
  }
  func.func @transform_5(%arg0: i32, %arg1: memref<2x10xi32, #tpu.memory_space<smem>>) -> (i32, i32) {
    %c0_i32 = arith.constant 0 : i32
    %c0_i32_0 = arith.constant 0 : i32
    %c0_i32_1 = arith.constant 0 : i32
    return %c0_i32, %c0_i32_0 : i32, i32
  }
  func.func @transform_6(%arg0: i32, %arg1: memref<2x10xi32, #tpu.memory_space<smem>>) -> (i32, i32) {
    %c0_i32 = arith.constant 0 : i32
    %c0_i32_0 = arith.constant 0 : i32
    %c0_i32_1 = arith.constant 0 : i32
    return %c0_i32, %c0_i32_0 : i32, i32
  }
  func.func @transform_7(%arg0: i32, %arg1: memref<2x10xi32, #tpu.memory_space<smem>>) -> (i32, i32) {
    %c0_i32 = arith.constant 0 : i32
    %c0_i32_0 = arith.constant 0 : i32
    %c0_i32_1 = arith.constant 0 : i32
    return %c0_i32, %c0_i32_0 : i32, i32
  }
  func.func @transform_8(%arg0: i32, %arg1: memref<2x10xi32, #tpu.memory_space<smem>>) -> (i32, i32) {
    %c0_i32 = arith.constant 0 : i32
    %c0_i32_0 = arith.constant 0 : i32
    %c0_i32_1 = arith.constant 0 : i32
    return %c0_i32, %c0_i32_0 : i32, i32
  }
  func.func @transform_9(%arg0: i32, %arg1: memref<2x10xi32, #tpu.memory_space<smem>>) -> (i32, i32) {
    %c0_i32 = arith.constant 0 : i32
    %c0_i32_0 = arith.constant 0 : i32
    %c0_i32_1 = arith.constant 0 : i32
    return %c0_i32, %c0_i32_0 : i32, i32
  }
  func.func @transform_10(%arg0: i32, %arg1: memref<2x10xi32, #tpu.memory_space<smem>>) -> (i32, i32) {
    %c0_i32 = arith.constant 0 : i32
    %c0_i32_0 = arith.constant 0 : i32
    %c0_i32_1 = arith.constant 0 : i32
    return %c0_i32, %c0_i32_0 : i32, i32
  }
  func.func @transform_11(%arg0: i32, %arg1: memref<2x10xi32, #tpu.memory_space<smem>>) -> (i32, i32) {
    %c0_i32 = arith.constant 0 : i32
    %c0_i32_0 = arith.constant 0 : i32
    %c0_i32_1 = arith.constant 0 : i32
    return %c0_i32, %c0_i32_0 : i32, i32
  }
  func.func @transform_12(%arg0: i32, %arg1: memref<2x10xi32, #tpu.memory_space<smem>>) -> (i32, i32) {
    %c0_i32 = arith.constant 0 : i32
    %c0_i32_0 = arith.constant 0 : i32
    %c0_i32_1 = arith.constant 0 : i32
    return %c0_i32, %c0_i32_0 : i32, i32
  }
  func.func @transform_13(%arg0: i32, %arg1: memref<2x10xi32, #tpu.memory_space<smem>>) -> (i32, i32) {
    %c0_i32 = arith.constant 0 : i32
    %c0_i32_0 = arith.constant 0 : i32
    return %arg0, %c0_i32 : i32, i32
  }
}

</mosaic_0001>

<llo_original>
// kernel: eq1to2_set_forward.1
$region0: #{eq1to2_set_forward.1}
  #allocation0 [shape = 'u32[]', space=smem, size = 0x4, offset = 0x4, fixed_abs, tag = 'smem constant byte address 0x4 - core index']
  #allocation1 [shape = 'u32[144,128]{1,0:T(1,128)}', space=vmem, size = 0x12000, scoped, tag = 'internal scratch']
  #allocation2 [shape = 's32[1]{0}', space=sflag, size = 0x4, scoped, tag = 'scoped memory for eq1to2_set_forward.1']
  #allocation3 [shape = 'u8[1024]{0}', space=smem, size = 0x400, scoped, tag = 'prefetched SMEM operand 0']
  %s0 = inlined_call_operand.vmem [shape: s32[2,10], index: 0, kind: input, shape index: {}]
  %s1 = inlined_call_operand.vmem [shape: bf16[256,32], index: 1, kind: input, shape index: {}]
  %s2 = inlined_call_operand.vmem [shape: bf16[2,10], index: 2, kind: input, shape index: {}]
  %s3 = inlined_call_operand.vmem [shape: bf16[32,320], index: 3, kind: input, shape index: {}]
  %s4 = inlined_call_operand.vmem [shape: bf16[50,34], index: 4, kind: input, shape index: {}]
  %s5 = inlined_call_operand.vmem [shape: f32[1,64], index: 5, kind: input, shape index: {}]
  %s6 = inlined_call_operand.vmem [shape: bf16[64,64], index: 6, kind: input, shape index: {}]
  %s7 = inlined_call_operand.vmem [shape: f32[1,64], index: 7, kind: input, shape index: {}]
  %s8 = inlined_call_operand.vmem [shape: bf16[2,50], index: 8, kind: input, shape index: {}]
  %s9 = inlined_call_operand.vmem [shape: bf16[64,64], index: 9, kind: input, shape index: {}]
  %s10 = inlined_call_operand.vmem [shape: f32[1,64], index: 10, kind: input, shape index: {}]
  %s11 = inlined_call_operand.vmem [shape: f32[2,64], index: 11, kind: input, shape index: {}]
  %s12 = inlined_call_operand.vmem [shape: bf16[64,128], index: 12, kind: input, shape index: {}]
  %s13 = inlined_call_operand.vmem [shape: f32[1,128], index: 13, kind: input, shape index: {}]
  %s14 = inlined_call_operand.vmem [shape: f32[16,128], index: 14, kind: output, shape index: {}]
  %s15 = sld [smem:[#allocation0]]
  $region85: #{eq1to2_set_forward.1} parent=0
    _
  %s17 = ssub.s32 1, %s15
  %s18 = scalar_select 0, %s17, %s15
  %s19 = sshll.u32 %s0, 4
  %s20 = int_to_ptr.vmem [resolvable:$true] %s19
  %22 = dma.vmem_to_smem %s20, 32, [#allocation3], [#allocation2]
  %23 = dma.done [#allocation2], 32
  %24 = sfence
  loop: start=0, step=1, limit=4
  $region2: #{eq1to2_set_forward.1} parent=0 // loop_pre_header
    _
  $region3: #{eq1to2_set_forward.1} parent=0 // loop_header
    %s26 = sphi 0, %s30
    %p27 = scmp.ge.s32.totalorder %s26, 4
    %s34 = sphi 0, %s34
    %s36 = sphi 0, %s34
    %s37 = sphi 0, %s36
    %s51 = sphi 0, %s37
    %s55 = sphi 0, %s55
    %s57 = sphi 0, %s55
    %s58 = sphi 0, %s57
    %s72 = sphi 0, %s58
    %s76 = sphi 0, %s76
    %s78 = sphi 0, %s76
    %s79 = sphi 0, %s78
    %s93 = sphi 0, %s79
    %s97 = sphi 0, %s97
    %s99 = sphi 0, %s97
    %s100 = sphi 0, %s99
    %s114 = sphi 0, %s100
    %s118 = sphi 0, %s118
    %s120 = sphi 0, %s118
    %s121 = sphi 0, %s120
    %s135 = sphi 0, %s121
    %s139 = sphi 0, %s139
    %s141 = sphi 0, %s139
    %s142 = sphi 0, %s141
    %s156 = sphi 0, %s142
    %s160 = sphi 0, %s160
    %s162 = sphi 0, %s160
    %s163 = sphi 0, %s162
    %s177 = sphi 0, %s163
    %s181 = sphi 0, %s181
    %s183 = sphi 0, %s181
    %s184 = sphi 0, %s183
    %s198 = sphi 0, %s184
    %s202 = sphi 0, %s202
    %s204 = sphi 0, %s202
    %s205 = sphi 0, %s204
    %s219 = sphi 0, %s205
    %s223 = sphi 0, %s223
    %s225 = sphi 0, %s223
    %s226 = sphi 0, %s225
    %s240 = sphi 0, %s226
    %s244 = sphi 0, %s244
    %s246 = sphi 0, %s244
    %s247 = sphi 0, %s246
    %s261 = sphi 0, %s247
    %s265 = sphi 0, %s265
    %s267 = sphi 0, %s265
    %s268 = sphi 0, %s267
    %s282 = sphi 0, %s268
    %s286 = sphi 0, %s286
    %s288 = sphi 0, %s286
    %s289 = sphi 0, %s288
    %s303 = sphi 0, %s289
    %s309 = sphi 0, %s311
    %s312 = sphi 0, %s309
    %s313 = sphi 0, %s312
    %s329 = sphi 0, %s313
  $region4: #{eq1to2_set_forward.1} parent=0 // loop_header_branch
    %29 = sbr.rel (%p27) target = $region8
  $region5: #{eq1to2_set_forward.1} parent=0 // loop_body
    %s31 = ssub.s32 %s26, 1
    %s32 = ssub.s32 %s26, 2
    %s33 = sadd.s32 %s26, 1
    %s35 = sadd.s32 %s34, 1
    %p38 = scmp.eq.s32.totalorder %s26, 1
    %p39 = scmp.ne.s32.totalorder %s34, %s36
    %p40 = scmp.eq.s32.totalorder %s26, 0
    %p41 = por %p39, %p40
    %p42 = scmp.ne.s32.totalorder %s34, %s36
    %p43 = scmp.eq.s32.totalorder %s31, 1
    %p44 = por %p42, %p43
    %p45 = scmp.ne.s32.totalorder %s36, %s37
    %p46 = scmp.eq.s32.totalorder %s31, 0
    %p47 = por %p45, %p46
    %p48 = scmp.ne.s32.totalorder %s36, %s37
    %p49 = scmp.eq.s32.totalorder %s32, 1
    %p50 = por %p48, %p49
    %p52 = scmp.ne.s32.totalorder %s37, %s51
    %p53 = scmp.eq.s32.totalorder %s32, 0
    %p54 = por %p52, %p53
    %s56 = sadd.s32 %s55, 1
    %p59 = scmp.eq.s32.totalorder %s26, 1
    %p60 = scmp.ne.s32.totalorder %s55, %s57
    %p61 = scmp.eq.s32.totalorder %s26, 0
    %p62 = por %p60, %p61
    %p63 = scmp.ne.s32.totalorder %s55, %s57
    %p64 = scmp.eq.s32.totalorder %s31, 1
    %p65 = por %p63, %p64
    %p66 = scmp.ne.s32.totalorder %s57, %s58
    %p67 = scmp.eq.s32.totalorder %s31, 0
    %p68 = por %p66, %p67
    %p69 = scmp.ne.s32.totalorder %s57, %s58
    %p70 = scmp.eq.s32.totalorder %s32, 1
    %p71 = por %p69, %p70
    %p73 = scmp.ne.s32.totalorder %s58, %s72
    %p74 = scmp.eq.s32.totalorder %s32, 0
    %p75 = por %p73, %p74
    %s77 = sadd.s32 %s76, 1
    %p80 = scmp.eq.s32.totalorder %s26, 1
    %p81 = scmp.ne.s32.totalorder %s76, %s78
    %p82 = scmp.eq.s32.totalorder %s26, 0
    %p83 = por %p81, %p82
    %p84 = scmp.ne.s32.totalorder %s76, %s78
    %p85 = scmp.eq.s32.totalorder %s31, 1
    %p86 = por %p84, %p85
    %p87 = scmp.ne.s32.totalorder %s78, %s79
    %p88 = scmp.eq.s32.totalorder %s31, 0
    %p89 = por %p87, %p88
    %p90 = scmp.ne.s32.totalorder %s78, %s79
    %p91 = scmp.eq.s32.totalorder %s32, 1
    %p92 = por %p90, %p91
    %p94 = scmp.ne.s32.totalorder %s79, %s93
    %p95 = scmp.eq.s32.totalorder %s32, 0
    %p96 = por %p94, %p95
    %s98 = sadd.s32 %s97, 1
    %p101 = scmp.eq.s32.totalorder %s26, 1
    %p102 = scmp.ne.s32.totalorder %s97, %s99
    %p103 = scmp.eq.s32.totalorder %s26, 0
    %p104 = por %p102, %p103
    %p105 = scmp.ne.s32.totalorder %s97, %s99
    %p106 = scmp.eq.s32.totalorder %s31, 1
    %p107 = por %p105, %p106
    %p108 = scmp.ne.s32.totalorder %s99, %s100
    %p109 = scmp.eq.s32.totalorder %s31, 0
    %p110 = por %p108, %p109
    %p111 = scmp.ne.s32.totalorder %s99, %s100
    %p112 = scmp.eq.s32.totalorder %s32, 1
    %p113 = por %p111, %p112
    %p115 = scmp.ne.s32.totalorder %s100, %s114
    %p116 = scmp.eq.s32.totalorder %s32, 0
    %p117 = por %p115, %p116
    %s119 = sadd.s32 %s118, 1
    %p122 = scmp.eq.s32.totalorder %s26, 1
    %p123 = scmp.ne.s32.totalorder %s118, %s120
    %p124 = scmp.eq.s32.totalorder %s26, 0
    %p125 = por %p123, %p124
    %p126 = scmp.ne.s32.totalorder %s118, %s120
    %p127 = scmp.eq.s32.totalorder %s31, 1
    %p128 = por %p126, %p127
    %p129 = scmp.ne.s32.totalorder %s120, %s121
    %p130 = scmp.eq.s32.totalorder %s31, 0
    %p131 = por %p129, %p130
    %p132 = scmp.ne.s32.totalorder %s120, %s121
    %p133 = scmp.eq.s32.totalorder %s32, 1
    %p134 = por %p132, %p133
    %p136 = scmp.ne.s32.totalorder %s121, %s135
    %p137 = scmp.eq.s32.totalorder %s32, 0
    %p138 = por %p136, %p137
    %s140 = sadd.s32 %s139, 1
    %p143 = scmp.eq.s32.totalorder %s26, 1
    %p144 = scmp.ne.s32.totalorder %s139, %s141
    %p145 = scmp.eq.s32.totalorder %s26, 0
    %p146 = por %p144, %p145
    %p147 = scmp.ne.s32.totalorder %s139, %s141
    %p148 = scmp.eq.s32.totalorder %s31, 1
    %p149 = por %p147, %p148
    %p150 = scmp.ne.s32.totalorder %s141, %s142
    %p151 = scmp.eq.s32.totalorder %s31, 0
    %p152 = por %p150, %p151
    %p153 = scmp.ne.s32.totalorder %s141, %s142
    %p154 = scmp.eq.s32.totalorder %s32, 1
    %p155 = por %p153, %p154
    %p157 = scmp.ne.s32.totalorder %s142, %s156
    %p158 = scmp.eq.s32.totalorder %s32, 0
    %p159 = por %p157, %p158
    %s161 = sadd.s32 %s160, 1
    %p164 = scmp.eq.s32.totalorder %s26, 1
    %p165 = scmp.ne.s32.totalorder %s160, %s162
    %p166 = scmp.eq.s32.totalorder %s26, 0
    %p167 = por %p165, %p166
    %p168 = scmp.ne.s32.totalorder %s160, %s162
    %p169 = scmp.eq.s32.totalorder %s31, 1
    %p170 = por %p168, %p169
    %p171 = scmp.ne.s32.totalorder %s162, %s163
    %p172 = scmp.eq.s32.totalorder %s31, 0
    %p173 = por %p171, %p172
    %p174 = scmp.ne.s32.totalorder %s162, %s163
    %p175 = scmp.eq.s32.totalorder %s32, 1
    %p176 = por %p174, %p175
    %p178 = scmp.ne.s32.totalorder %s163, %s177
    %p179 = scmp.eq.s32.totalorder %s32, 0
    %p180 = por %p178, %p179
    %s182 = sadd.s32 %s181, 1
    %p185 = scmp.eq.s32.totalorder %s26, 1
    %p186 = scmp.ne.s32.totalorder %s181, %s183
    %p187 = scmp.eq.s32.totalorder %s26, 0
    %p188 = por %p186, %p187
    %p189 = scmp.ne.s32.totalorder %s181, %s183
    %p190 = scmp.eq.s32.totalorder %s31, 1
    %p191 = por %p189, %p190
    %p192 = scmp.ne.s32.totalorder %s183, %s184
    %p193 = scmp.eq.s32.totalorder %s31, 0
    %p194 = por %p192, %p193
    %p195 = scmp.ne.s32.totalorder %s183, %s184
    %p196 = scmp.eq.s32.totalorder %s32, 1
    %p197 = por %p195, %p196
    %p199 = scmp.ne.s32.totalorder %s184, %s198
    %p200 = scmp.eq.s32.totalorder %s32, 0
    %p201 = por %p199, %p200
    %s203 = sadd.s32 %s202, 1
    %p206 = scmp.eq.s32.totalorder %s26, 1
    %p207 = scmp.ne.s32.totalorder %s202, %s204
    %p208 = scmp.eq.s32.totalorder %s26, 0
    %p209 = por %p207, %p208
    %p210 = scmp.ne.s32.totalorder %s202, %s204
    %p211 = scmp.eq.s32.totalorder %s31, 1
    %p212 = por %p210, %p211
    %p213 = scmp.ne.s32.totalorder %s204, %s205
    %p214 = scmp.eq.s32.totalorder %s31, 0
    %p215 = por %p213, %p214
    %p216 = scmp.ne.s32.totalorder %s204, %s205
    %p217 = scmp.eq.s32.totalorder %s32, 1
    %p218 = por %p216, %p217
    %p220 = scmp.ne.s32.totalorder %s205, %s219
    %p221 = scmp.eq.s32.totalorder %s32, 0
    %p222 = por %p220, %p221
    %s224 = sadd.s32 %s223, 1
    %p227 = scmp.eq.s32.totalorder %s26, 1
    %p228 = scmp.ne.s32.totalorder %s223, %s225
    %p229 = scmp.eq.s32.totalorder %s26, 0
    %p230 = por %p228, %p229
    %p231 = scmp.ne.s32.totalorder %s223, %s225
    %p232 = scmp.eq.s32.totalorder %s31, 1
    %p233 = por %p231, %p232
    %p234 = scmp.ne.s32.totalorder %s225, %s226
    %p235 = scmp.eq.s32.totalorder %s31, 0
    %p236 = por %p234, %p235
    %p237 = scmp.ne.s32.totalorder %s225, %s226
    %p238 = scmp.eq.s32.totalorder %s32, 1
    %p239 = por %p237, %p238
    %p241 = scmp.ne.s32.totalorder %s226, %s240
    %p242 = scmp.eq.s32.totalorder %s32, 0
    %p243 = por %p241, %p242
    %s245 = sadd.s32 %s244, 1
    %p248 = scmp.eq.s32.totalorder %s26, 1
    %p249 = scmp.ne.s32.totalorder %s244, %s246
    %p250 = scmp.eq.s32.totalorder %s26, 0
    %p251 = por %p249, %p250
    %p252 = scmp.ne.s32.totalorder %s244, %s246
    %p253 = scmp.eq.s32.totalorder %s31, 1
    %p254 = por %p252, %p253
    %p255 = scmp.ne.s32.totalorder %s246, %s247
    %p256 = scmp.eq.s32.totalorder %s31, 0
    %p257 = por %p255, %p256
    %p258 = scmp.ne.s32.totalorder %s246, %s247
    %p259 = scmp.eq.s32.totalorder %s32, 1
    %p260 = por %p258, %p259
    %p262 = scmp.ne.s32.totalorder %s247, %s261
    %p263 = scmp.eq.s32.totalorder %s32, 0
    %p264 = por %p262, %p263
    %s266 = sadd.s32 %s265, 1
    %p269 = scmp.eq.s32.totalorder %s26, 1
    %p270 = scmp.ne.s32.totalorder %s265, %s267
    %p271 = scmp.eq.s32.totalorder %s26, 0
    %p272 = por %p270, %p271
    %p273 = scmp.ne.s32.totalorder %s265, %s267
    %p274 = scmp.eq.s32.totalorder %s31, 1
    %p275 = por %p273, %p274
    %p276 = scmp.ne.s32.totalorder %s267, %s268
    %p277 = scmp.eq.s32.totalorder %s31, 0
    %p278 = por %p276, %p277
    %p279 = scmp.ne.s32.totalorder %s267, %s268
    %p280 = scmp.eq.s32.totalorder %s32, 1
    %p281 = por %p279, %p280
    %p283 = scmp.ne.s32.totalorder %s268, %s282
    %p284 = scmp.eq.s32.totalorder %s32, 0
    %p285 = por %p283, %p284
    %s287 = sadd.s32 %s286, 1
    %p290 = scmp.eq.s32.totalorder %s26, 1
    %p291 = scmp.ne.s32.totalorder %s286, %s288
    %p292 = scmp.eq.s32.totalorder %s26, 0
    %p293 = por %p291, %p292
    %p294 = scmp.ne.s32.totalorder %s286, %s288
    %p295 = scmp.eq.s32.totalorder %s31, 1
    %p296 = por %p294, %p295
    %p297 = scmp.ne.s32.totalorder %s288, %s289
    %p298 = scmp.eq.s32.totalorder %s31, 0
    %p299 = por %p297, %p298
    %p300 = scmp.ne.s32.totalorder %s288, %s289
    %p301 = scmp.eq.s32.totalorder %s32, 1
    %p302 = por %p300, %p301
    %p304 = scmp.ne.s32.totalorder %s289, %s303
    %p305 = scmp.eq.s32.totalorder %s32, 0
    %p306 = por %p304, %p305
    %s307 = ssub.s32 %s26, %s33
    %p308 = scmp.eq.s32.totalorder %s307, 0
    %s310 = sadd.s32 %s309, 1
    %s311 = scalar_select %p308, %s309, %s310
    %p314 = pneg %p308
    %p315 = scmp.eq.s32.totalorder %s26, 1
    %p316 = por %p314, %p315
    %p317 = scmp.ne.s32.totalorder %s309, %s312
    %p318 = scmp.eq.s32.totalorder %s26, 0
    %p319 = por %p317, %p318
    %p320 = scmp.ne.s32.totalorder %s309, %s312
    %p321 = scmp.eq.s32.totalorder %s31, 1
    %p322 = por %p320, %p321
    %p323 = scmp.ne.s32.totalorder %s312, %s313
    %p324 = scmp.eq.s32.totalorder %s31, 0
    %p325 = por %p323, %p324
    %p326 = scmp.ne.s32.totalorder %s312, %s313
    %p327 = scmp.eq.s32.totalorder %s32, 1
    %p328 = por %p326, %p327
    %p330 = scmp.ne.s32.totalorder %s313, %s329
    %p331 = scmp.eq.s32.totalorder %s32, 0
    %p332 = por %p330, %p331
    %p333 = scmp.le.s32.totalorder 1, %s26
    %p334 = scmp.lt.s32.totalorder %s26, 3
    %p335 = pnand %p333, %p334
    %p336 = pneg %p335
    // Predicated region
    $region9: #{eq1to2_set_forward.1} parent=5 // pred_check
      _
    $region10: #{eq1to2_set_forward.1} parent=5 // pred_check_branch
      %338 = sbr.rel (%p335) target = $region12
    $region11: #{eq1to2_set_forward.1} parent=5 // pred_region
      %s339 = ssub.s32 %s26, 1
      // Predicated region
      $region13: #{eq1to2_set_forward.1} parent=11 // pred_check
        %p340 = pneg %p47
      $region14: #{eq1to2_set_forward.1} parent=11 // pred_check_branch
        %342 = sbr.rel (%p340) target = $region16
      $region15: #{eq1to2_set_forward.1} parent=11 // pred_region
        _
      $region16: #{eq1to2_set_forward.1} parent=11 // pred_fallthru
        _
      // Predicated region
      $region17: #{eq1to2_set_forward.1} parent=11 // pred_check
        %p343 = pneg %p68
      $region18: #{eq1to2_set_forward.1} parent=11 // pred_check_branch
        %345 = sbr.rel (%p343) target = $region20
      $region19: #{eq1to2_set_forward.1} parent=11 // pred_region
        _
      $region20: #{eq1to2_set_forward.1} parent=11 // pred_fallthru
        _
      // Predicated region
      $region21: #{eq1to2_set_forward.1} parent=11 // pred_check
        %p346 = pneg %p89
      $region22: #{eq1to2_set_forward.1} parent=11 // pred_check_branch
        %348 = sbr.rel (%p346) target = $region24
      $region23: #{eq1to2_set_forward.1} parent=11 // pred_region
        _
      $region24: #{eq1to2_set_forward.1} parent=11 // pred_fallthru
        _
      // Predicated region
      $region25: #{eq1to2_set_forward.1} parent=11 // pred_check
        %p349 = pneg %p110
      $region26: #{eq1to2_set_forward.1} parent=11 // pred_check_branch
        %351 = sbr.rel (%p349) target = $region28
      $region27: #{eq1to2_set_forward.1} parent=11 // pred_region
        _
      $region28: #{eq1to2_set_forward.1} parent=11 // pred_fallthru
        _
      // Predicated region
      $region29: #{eq1to2_set_forward.1} parent=11 // pred_check
        %p352 = pneg %p131
      $region30: #{eq1to2_set_forward.1} parent=11 // pred_check_branch
        %354 = sbr.rel (%p352) target = $region32
      $region31: #{eq1to2_set_forward.1} parent=11 // pred_region
        _
      $region32: #{eq1to2_set_forward.1} parent=11 // pred_fallthru
        _
      // Predicated region
      $region33: #{eq1to2_set_forward.1} parent=11 // pred_check
        %p355 = pneg %p152
      $region34: #{eq1to2_set_forward.1} parent=11 // pred_check_branch
        %357 = sbr.rel (%p355) target = $region36
      $region35: #{eq1to2_set_forward.1} parent=11 // pred_region
        _
      $region36: #{eq1to2_set_forward.1} parent=11 // pred_fallthru
        _
      // Predicated region
      $region37: #{eq1to2_set_forward.1} parent=11 // pred_check
        %p358 = pneg %p173
      $region38: #{eq1to2_set_forward.1} parent=11 // pred_check_branch
        %360 = sbr.rel (%p358) target = $region40
      $region39: #{eq1to2_set_forward.1} parent=11 // pred_region
        _
      $region40: #{eq1to2_set_forward.1} parent=11 // pred_fallthru
        _
      // Predicated region
      $region41: #{eq1to2_set_forward.1} parent=11 // pred_check
        %p361 = pneg %p194
      $region42: #{eq1to2_set_forward.1} parent=11 // pred_check_branch
        %363 = sbr.rel (%p361) target = $region44
      $region43: #{eq1to2_set_forward.1} parent=11 // pred_region
        _
      $region44: #{eq1to2_set_forward.1} parent=11 // pred_fallthru
        _
      // Predicated region
      $region45: #{eq1to2_set_forward.1} parent=11 // pred_check
        %p364 = pneg %p215
      $region46: #{eq1to2_set_forward.1} parent=11 // pred_check_branch
        %366 = sbr.rel (%p364) target = $region48
      $region47: #{eq1to2_set_forward.1} parent=11 // pred_region
        _
      $region48: #{eq1to2_set_forward.1} parent=11 // pred_fallthru
        _
      // Predicated region
      $region49: #{eq1to2_set_forward.1} parent=11 // pred_check
        %p367 = pneg %p236
      $region50: #{eq1to2_set_forward.1} parent=11 // pred_check_branch
        %369 = sbr.rel (%p367) target = $region52
      $region51: #{eq1to2_set_forward.1} parent=11 // pred_region
        _
      $region52: #{eq1to2_set_forward.1} parent=11 // pred_fallthru
        _
      // Predicated region
      $region53: #{eq1to2_set_forward.1} parent=11 // pred_check
        %p370 = pneg %p257
      $region54: #{eq1to2_set_forward.1} parent=11 // pred_check_branch
        %372 = sbr.rel (%p370) target = $region56
      $region55: #{eq1to2_set_forward.1} parent=11 // pred_region
        _
      $region56: #{eq1to2_set_forward.1} parent=11 // pred_fallthru
        _
      // Predicated region
      $region57: #{eq1to2_set_forward.1} parent=11 // pred_check
        %p373 = pneg %p278
      $region58: #{eq1to2_set_forward.1} parent=11 // pred_check_branch
        %375 = sbr.rel (%p373) target = $region60
      $region59: #{eq1to2_set_forward.1} parent=11 // pred_region
        _
      $region60: #{eq1to2_set_forward.1} parent=11 // pred_fallthru
        _
      // Predicated region
      $region61: #{eq1to2_set_forward.1} parent=11 // pred_check
        %p376 = pneg %p299
      $region62: #{eq1to2_set_forward.1} parent=11 // pred_check_branch
        %378 = sbr.rel (%p376) target = $region64
      $region63: #{eq1to2_set_forward.1} parent=11 // pred_region
        _
      $region64: #{eq1to2_set_forward.1} parent=11 // pred_fallthru
        _
    $region12: #{eq1to2_set_forward.1} parent=5 // pred_fallthru
      _
    %p379 = scmp.lt.s32.totalorder %s26, 2
    // Predicated region
    $region65: #{eq1to2_set_forward.1} parent=5 // pred_check
      %p380 = pneg %p379
    $region66: #{eq1to2_set_forward.1} parent=5 // pred_check_branch
      %382 = sbr.rel (%p380) target = $region68
    $region67: #{eq1to2_set_forward.1} parent=5 // pred_region
      _
    $region68: #{eq1to2_set_forward.1} parent=5 // pred_fallthru
      _
    %p383 = scmp.le.s32.totalorder 1, %s26
    %p384 = scmp.lt.s32.totalorder %s26, 3
    %p385 = pnand %p383, %p384
    %p386 = pneg %p385
    // Predicated region
    $region69: #{eq1to2_set_forward.1} parent=5 // pred_check
      _
    $region70: #{eq1to2_set_forward.1} parent=5 // pred_check_branch
      %388 = sbr.rel (%p385) target = $region72
    $region71: #{eq1to2_set_forward.1} parent=5 // pred_region
      %s389 = ssub.s32 %s26, 1
      %p390 = pneg %p47
      %p391 = pneg %p44
      %p392 = pneg %p68
      %p393 = pneg %p65
      %p394 = pneg %p89
      %p395 = pneg %p86
      %p396 = pneg %p110
      %p397 = pneg %p107
      %p398 = pneg %p131
      %p399 = pneg %p128
      %p400 = pneg %p152
      %p401 = pneg %p149
      %p402 = pneg %p173
      %p403 = pneg %p170
      %p404 = pneg %p194
      %p405 = pneg %p191
      %p406 = pneg %p215
      %p407 = pneg %p212
      %p408 = pneg %p236
      %p409 = pneg %p233
      %p410 = pneg %p257
      %p411 = pneg %p254
      %p412 = pneg %p278
      %p413 = pneg %p275
      %p414 = pneg %p299
      %p415 = pneg %p296
      %p416 = pneg %p325
      %p417 = pneg %p322
      %p418 = scmp.lt.s32.totalorder %s31, 1
      %s419 = scalar_select %p418, %s31, 1
      %s420 = smul.addr %s419, 8
      %s421 = scalar_lea.vmem %s14, %s420
      %p422 = scmp.lt.s32.totalorder %s31, 1
      %s423 = scalar_select %p422, %s31, 1
      %s424 = smul.addr %s423, 8
      %s425 = scalar_lea.vmem %s14, %s424
      %v427 = vlaneseq
      %v428 = vand.u32 %v427, 127
      %v429 = vadd.s32 %v428, 128
      %s430 = smul.u32 %s31, 128
      %s431 = sld [smem:[#allocation3 + %s430]]
      %v432 = vstv %s431
      %vm433 = vcmp.eq.s32.totalorder %v428, %v432
      %vm434 = vcmp.eq.s32.totalorder %v429, %v432
      %v435 = vsel %vm433, 1, 0
      %v436 = vsel %vm434, 1, 0
      %v437 = vcvt.s32.f32 %v435
      %v438 = vcvt.s32.f32 %v436
      %s439 = sadd.s32 %s430, 1
      %s440 = sld [smem:[#allocation3 + %s439]]
      %v441 = vstv %s440
      %vm442 = vcmp.eq.s32.totalorder %v428, %v441
      %vm443 = vcmp.eq.s32.totalorder %v429, %v441
      %v444 = vsel %vm442, 1, 0
      %v445 = vsel %vm443, 1, 0
      %v446 = vcvt.s32.f32 %v444
      %v447 = vcvt.s32.f32 %v445
      %s448 = sadd.s32 %s430, 2
      %s449 = sld [smem:[#allocation3 + %s448]]
      %v450 = vstv %s449
      %vm451 = vcmp.eq.s32.totalorder %v428, %v450
      %vm452 = vcmp.eq.s32.totalorder %v429, %v450
      %v453 = vsel %vm451, 1, 0
      %v454 = vsel %vm452, 1, 0
      %v455 = vcvt.s32.f32 %v453
      %v456 = vcvt.s32.f32 %v454
      %s457 = sadd.s32 %s430, 3
      %s458 = sld [smem:[#allocation3 + %s457]]
      %v459 = vstv %s458
      %vm460 = vcmp.eq.s32.totalorder %v428, %v459
      %vm461 = vcmp.eq.s32.totalorder %v429, %v459
      %v462 = vsel %vm460, 1, 0
      %v463 = vsel %vm461, 1, 0
      %v464 = vcvt.s32.f32 %v462
      %v465 = vcvt.s32.f32 %v463
      %s466 = sadd.s32 %s430, 4
      %s467 = sld [smem:[#allocation3 + %s466]]
      %v468 = vstv %s467
      %vm469 = vcmp.eq.s32.totalorder %v428, %v468
      %vm470 = vcmp.eq.s32.totalorder %v429, %v468
      %v471 = vsel %vm469, 1, 0
      %v472 = vsel %vm470, 1, 0
      %v473 = vcvt.s32.f32 %v471
      %v474 = vcvt.s32.f32 %v472
      %s475 = sadd.s32 %s430, 5
      %s476 = sld [smem:[#allocation3 + %s475]]
      %s477 = sadd.s32 %s476, 128
      %v478 = vstv %s477
      %vm479 = vcmp.eq.s32.totalorder %v428, %v478
      %vm480 = vcmp.eq.s32.totalorder %v429, %v478
      %v481 = vsel %vm479, 1, 0
      %v482 = vsel %vm480, 1, 0
      %v483 = vcvt.s32.f32 %v481
      %v484 = vcvt.s32.f32 %v482
      %s485 = sadd.s32 %s430, 6
      %s486 = sld [smem:[#allocation3 + %s485]]
      %s487 = sadd.s32 %s486, 128
      %v488 = vstv %s487
      %vm489 = vcmp.eq.s32.totalorder %v428, %v488
      %vm490 = vcmp.eq.s32.totalorder %v429, %v488
      %v491 = vsel %vm489, 1, 0
      %v492 = vsel %vm490, 1, 0
      %v493 = vcvt.s32.f32 %v491
      %v494 = vcvt.s32.f32 %v492
      %s495 = sadd.s32 %s430, 7
      %s496 = sld [smem:[#allocation3 + %s495]]
      %s497 = sadd.s32 %s496, 128
      %v498 = vstv %s497
      %vm499 = vcmp.eq.s32.totalorder %v428, %v498
      %vm500 = vcmp.eq.s32.totalorder %v429, %v498
      %v501 = vsel %vm499, 1, 0
      %v502 = vsel %vm500, 1, 0
      %v503 = vcvt.s32.f32 %v501
      %v504 = vcvt.s32.f32 %v502
      %s505 = sadd.s32 %s430, 8
      %s506 = sld [smem:[#allocation3 + %s505]]
      %s507 = sadd.s32 %s506, 128
      %v508 = vstv %s507
      %vm509 = vcmp.eq.s32.totalorder %v428, %v508
      %vm510 = vcmp.eq.s32.totalorder %v429, %v508
      %v511 = vsel %vm509, 1, 0
      %v512 = vsel %vm510, 1, 0
      %v513 = vcvt.s32.f32 %v511
      %v514 = vcvt.s32.f32 %v512
      %s515 = sadd.s32 %s430, 9
      %s516 = sld [smem:[#allocation3 + %s515]]
      %s517 = sadd.s32 %s516, 128
      %v518 = vstv %s517
      %vm519 = vcmp.eq.s32.totalorder %v428, %v518
      %vm520 = vcmp.eq.s32.totalorder %v429, %v518
      %v521 = vsel %vm519, 1, 0
      %v522 = vsel %vm520, 1, 0
      %v523 = vcvt.s32.f32 %v521
      %v524 = vcvt.s32.f32 %v522
      %vm525 = vcmask 1040384
      %v526 = vsel %vm525, %v437, %v446
      %v527 = vsel %vm525, %v438, %v447
      %vm528 = vcmask 1041408
      %v529 = vsel %vm528, %v526, %v455
      %v530 = vsel %vm528, %v527, %v456
      %vm531 = vcmask 1042432
      %v532 = vsel %vm531, %v529, %v464
      %v533 = vsel %vm531, %v530, %v465
      %vm534 = vcmask 1043456
      %v535 = vsel %vm534, %v532, %v473
      %v536 = vsel %vm534, %v533, %v474
      %vm537 = vcmask 1044480
      %v538 = vsel %vm537, %v535, %v483
      %v539 = vsel %vm537, %v536, %v484
      %vm540 = vcmask 1045504
      %v541 = vsel %vm540, %v538, %v493
      %v542 = vsel %vm540, %v539, %v494
      %vm543 = vcmask 1046528
      %v544 = vsel %vm543, %v541, %v503
      %v545 = vsel %vm543, %v542, %v504
      %v546 = vsel %vm525, %v513, %v523
      %v547 = vsel %vm525, %v514, %v524
      %v548 = vpack.c.bf16 %v546, %v544
      %v549 = vpack.c.bf16 %v547, %v545
      %v550 = vld [vmem:[%s1] sm:$0xf]
      %v551 = vld [vmem:[%s1 + $0x4] sm:$0xf]
      %v552 = vld [vmem:[%s1 + $0x8] sm:$0xf]
      %v553 = vld [vmem:[%s1 + $0xc] sm:$0xf]
      %v554 = vld [vmem:[%s1 + $0x10] sm:$0xf]
      %v555 = vld [vmem:[%s1 + $0x14] sm:$0xf]
      %v556 = vld [vmem:[%s1 + $0x18] sm:$0xf]
      %v557 = vld [vmem:[%s1 + $0x1c] sm:$0xf]
      %v558 = vld [vmem:[%s1 + $0x20] sm:$0xf]
      %v559 = vld [vmem:[%s1 + $0x24] sm:$0xf]
      %v560 = vld [vmem:[%s1 + $0x28] sm:$0xf]
      %v561 = vld [vmem:[%s1 + $0x2c] sm:$0xf]
      %v562 = vld [vmem:[%s1 + $0x30] sm:$0xf]
      %v563 = vld [vmem:[%s1 + $0x34] sm:$0xf]
      %v564 = vld [vmem:[%s1 + $0x38] sm:$0xf]
      %v565 = vld [vmem:[%s1 + $0x3c] sm:$0xf]
      %v566 = vld [vmem:[%s1 + $0x40] sm:$0xf]
      %v567 = vld [vmem:[%s1 + $0x44] sm:$0xf]
      %v568 = vld [vmem:[%s1 + $0x48] sm:$0xf]
      %v569 = vld [vmem:[%s1 + $0x4c] sm:$0xf]
      %v570 = vld [vmem:[%s1 + $0x50] sm:$0xf]
      %v571 = vld [vmem:[%s1 + $0x54] sm:$0xf]
      %v572 = vld [vmem:[%s1 + $0x58] sm:$0xf]
      %v573 = vld [vmem:[%s1 + $0x5c] sm:$0xf]
      %v574 = vld [vmem:[%s1 + $0x60] sm:$0xf]
      %v575 = vld [vmem:[%s1 + $0x64] sm:$0xf]
      %v576 = vld [vmem:[%s1 + $0x68] sm:$0xf]
      %v577 = vld [vmem:[%s1 + $0x6c] sm:$0xf]
      %v578 = vld [vmem:[%s1 + $0x70] sm:$0xf]
      %v579 = vld [vmem:[%s1 + $0x74] sm:$0xf]
      %v580 = vld [vmem:[%s1 + $0x78] sm:$0xf]
      %v581 = vld [vmem:[%s1 + $0x7c] sm:$0xf]
      %v614 = vunpack.c.l.b16 %v550
      %v615 = vunpack.c.l.b16 %v551
      %v616 = vunpack.c.l.b16 %v552
      %v617 = vunpack.c.l.b16 %v553
      %v618 = vunpack.c.l.b16 %v554
      %v619 = vunpack.c.l.b16 %v555
      %v620 = vunpack.c.l.b16 %v556
      %v621 = vunpack.c.l.b16 %v557
      %v622 = vunpack.c.l.b16 %v558
      %v623 = vunpack.c.l.b16 %v559
      %v624 = vunpack.c.l.b16 %v560
      %v625 = vunpack.c.l.b16 %v561
      %v626 = vunpack.c.l.b16 %v562
      %v627 = vunpack.c.l.b16 %v563
      %v628 = vunpack.c.l.b16 %v564
      %v629 = vunpack.c.l.b16 %v565
      %v630 = vunpack.c.l.b16 %v566
      %v631 = vunpack.c.l.b16 %v567
      %v632 = vunpack.c.l.b16 %v568
      %v633 = vunpack.c.l.b16 %v569
      %v634 = vunpack.c.l.b16 %v570
      %v635 = vunpack.c.l.b16 %v571
      %v636 = vunpack.c.l.b16 %v572
      %v637 = vunpack.c.l.b16 %v573
      %v638 = vunpack.c.l.b16 %v574
      %v639 = vunpack.c.l.b16 %v575
      %v640 = vunpack.c.l.b16 %v576
      %v641 = vunpack.c.l.b16 %v577
      %v642 = vunpack.c.l.b16 %v578
      %v643 = vunpack.c.l.b16 %v579
      %v644 = vunpack.c.l.b16 %v580
      %v645 = vunpack.c.l.b16 %v581
      %v646 = vpack.c.b16 %v615, %v614
      %v647 = vpack.c.b16 %v617, %v616
      %v648 = vpack.c.b16 %v619, %v618
      %v649 = vpack.c.b16 %v621, %v620
      %v650 = vpack.c.b16 %v623, %v622
      %v651 = vpack.c.b16 %v625, %v624
      %v652 = vpack.c.b16 %v627, %v626
      %v653 = vpack.c.b16 %v629, %v628
      %v654 = vpack.c.b16 %v631, %v630
      %v655 = vpack.c.b16 %v633, %v632
      %v656 = vpack.c.b16 %v635, %v634
      %v657 = vpack.c.b16 %v637, %v636
      %v658 = vpack.c.b16 %v639, %v638
      %v659 = vpack.c.b16 %v641, %v640
      %v660 = vpack.c.b16 %v643, %v642
      %v661 = vpack.c.b16 %v645, %v644
      %678 = vmatprep.subr.bf16.mxu0 0
      %679 = vmatpush1.bf16.msra.mxu0 %v653
      %680 = vmatprep.subr.bf16.mxu0 0
      %681 = vmatpush1.bf16.msra.mxu0 %v652
      %682 = vmatprep.subr.bf16.mxu0 0
      %683 = vmatpush1.bf16.msra.mxu0 %v651
      %684 = vmatprep.subr.bf16.mxu0 0
      %685 = vmatpush1.bf16.msra.mxu0 %v650
      %686 = vmatprep.subr.bf16.mxu0 0
      %687 = vmatpush1.bf16.msra.mxu0 %v649
      %688 = vmatprep.subr.bf16.mxu0 0
      %689 = vmatpush1.bf16.msra.mxu0 %v648
      %690 = vmatprep.subr.bf16.mxu0 0
      %691 = vmatpush1.bf16.msra.mxu0 %v647
      %692 = vmatprep.subr.bf16.mxu0 0
      %693 = vmatpush1.bf16.msra.mxu0 %v646
      %694 = vmatprep.subr.bf16.mxu0 0
      %695 = vmatpush2.bf16.msra.mxu0 %v661
      %696 = vmatprep.subr.bf16.mxu0 0
      %697 = vmatpush2.bf16.msra.mxu0 %v660
      %698 = vmatprep.subr.bf16.mxu0 0
      %699 = vmatpush2.bf16.msra.mxu0 %v659
      %700 = vmatprep.subr.bf16.mxu0 0
      %701 = vmatpush2.bf16.msra.mxu0 %v658
      %702 = vmatprep.subr.bf16.mxu0 0
      %703 = vmatpush2.bf16.msra.mxu0 %v657
      %704 = vmatprep.subr.bf16.mxu0 0
      %705 = vmatpush2.bf16.msra.mxu0 %v656
      %706 = vmatprep.subr.bf16.mxu0 0
      %707 = vmatpush2.bf16.msra.mxu0 %v655
      %708 = vmatprep.subr.bf16.mxu0 0
      %709 = vmatpush2.bf16.msra.mxu0 %v654
      %710 = vmatprep.mubr.bf16.mxu0 %v549
      %711 = vmatmul.mubr.bf16.gmra.mxu0 %v548
      %v712 = vpop.f32.mrf.mxu0
      %v713 = vadd.f32 0.0, %v712
      %v714 = vpop.f32.mrf.mxu0
      %v715 = vpop.f32.mrf.mxu0
      %v716 = vadd.f32 0.0, %v715
      %v717 = vpop.f32.mrf.mxu0
      %718 = vdwg.mxu0
      %v719 = vmax.f32 %v713, 0.0
      %v720 = vmax.f32 %v716, 0.0
      %v721 = vld [vmem:[%s2] sm:$0x1]
      %v722 = vpack.c.bf16 %v720, %v719
      %vm723 = vcmask 80896
      %v725 = vsel %vm723, %v721, 0
      %v728 = vsel %vm537, %v722, 0
      %730 = vmatprep.subr.bf16.mxu0 0
      %731 = vmatpush1.bf16.msra.mxu0 0
      %732 = vmatprep.subr.bf16.mxu0 0
      %733 = vmatpush1.bf16.msra.mxu0 0
      %734 = vmatprep.subr.bf16.mxu0 0
      %735 = vmatpush1.bf16.msra.mxu0 0
      %736 = vmatprep.subr.bf16.mxu0 0
      %737 = vmatpush1.bf16.msra.mxu0 0
      %738 = vmatprep.subr.bf16.mxu0 0
      %739 = vmatpush1.bf16.msra.mxu0 0
      %740 = vmatprep.subr.bf16.mxu0 0
      %741 = vmatpush1.bf16.msra.mxu0 0
      %742 = vmatprep.subr.bf16.mxu0 0
      %743 = vmatpush1.bf16.msra.mxu0 0
      %744 = vmatprep.subr.bf16.mxu0 0
      %745 = vmatpush1.bf16.msra.mxu0 %v728
      %746 = vmatprep.subr.bf16.mxu0 0
      %747 = vmatpush2.bf16.msra.mxu0 0
      %748 = vmatprep.subr.bf16.mxu0 0
      %749 = vmatpush2.bf16.msra.mxu0 0
      %750 = vmatprep.subr.bf16.mxu0 0
      %751 = vmatpush2.bf16.msra.mxu0 0
      %752 = vmatprep.subr.bf16.mxu0 0
      %753 = vmatpush2.bf16.msra.mxu0 0
      %754 = vmatprep.subr.bf16.mxu0 0
      %755 = vmatpush2.bf16.msra.mxu0 0
      %756 = vmatprep.subr.bf16.mxu0 0
      %757 = vmatpush2.bf16.msra.mxu0 0
      %758 = vmatprep.subr.bf16.mxu0 0
      %759 = vmatpush2.bf16.msra.mxu0 0
      %760 = vmatprep.subr.bf16.mxu0 0
      %761 = vmatpush2.bf16.msra.mxu0 0
      %762 = vmatprep.mubr.bf16.mxu0 0
      %763 = vmatmul.mubr.bf16.gmra.mxu0 %v725
      %v764 = vpop.f32.mrf.mxu0
      %v765 = vadd.f32 0.0, %v764
      %v766 = vpop.f32.mrf.mxu0
      %v767 = vpop.f32.mrf.mxu0
      %v768 = vpop.f32.mrf.mxu0
      %769 = vdwg.mxu0
      %v771 = vrot.slane %v765, 6
      %v773 = vsel %vm528, %v720, %v771
      %v774 = vpack.c.bf16 %v773, %v719
      %v775 = vld [vmem:[%s3] sm:$0xff]
      %v776 = vld [vmem:[%s3 + $0x8] sm:$0xf]
      %v777 = vld [vmem:[%s3 + $0xc] sm:$0xff]
      %v778 = vld [vmem:[%s3 + $0x14] sm:$0xf]
      %v779 = vld [vmem:[%s3 + $0x18] sm:$0xff]
      %v780 = vld [vmem:[%s3 + $0x20] sm:$0xf]
      %v781 = vld [vmem:[%s3 + $0x24] sm:$0xff]
      %v782 = vld [vmem:[%s3 + $0x2c] sm:$0xf]
      %v791 = vunpack.c.l.b16 %v775
      %v792 = vunpack.c.h.b16 %v775
      %v793 = vunpack.c.l.b16 %v776
      %v794 = vunpack.c.l.b16 %v777
      %v795 = vunpack.c.h.b16 %v777
      %v796 = vunpack.c.l.b16 %v778
      %v797 = vunpack.c.l.b16 %v779
      %v798 = vunpack.c.h.b16 %v779
      %v799 = vunpack.c.l.b16 %v780
      %v800 = vunpack.c.l.b16 %v781
      %v801 = vunpack.c.h.b16 %v781
      %v802 = vunpack.c.l.b16 %v782
      %v803 = vpack.c.b16 %v794, %v791
      %v804 = vpack.c.b16 %v795, %v792
      %v805 = vpack.c.b16 %v796, %v793
      %v806 = vpack.c.b16 %v800, %v797
      %v807 = vpack.c.b16 %v801, %v798
      %v808 = vpack.c.b16 %v802, %v799
      %vm815 = vcmask 261120
      %v817 = vsel %vm815, %v774, 0
      %819 = vmatprep.subr.bf16.mxu0 0
      %820 = vmatpush1.bf16.msra.mxu0 0
      %821 = vmatprep.subr.bf16.mxu0 0
      %822 = vmatpush1.bf16.msra.mxu0 0
      %823 = vmatprep.subr.bf16.mxu0 0
      %824 = vmatpush1.bf16.msra.mxu0 0
      %825 = vmatprep.subr.bf16.mxu0 0
      %826 = vmatpush1.bf16.msra.mxu0 0
      %827 = vmatprep.subr.bf16.mxu0 0
      %828 = vmatpush1.bf16.msra.mxu0 0
      %829 = vmatprep.subr.bf16.mxu0 0
      %830 = vmatpush1.bf16.msra.mxu0 0
      %831 = vmatprep.subr.bf16.mxu0 %v807
      %832 = vmatpush1.bf16.msra.mxu0 %v806
      %833 = vmatprep.subr.bf16.mxu0 %v804
      %834 = vmatpush1.bf16.msra.mxu0 %v803
      %835 = vmatprep.subr.bf16.mxu0 0
      %836 = vmatpush2.bf16.msra.mxu0 0
      %837 = vmatprep.subr.bf16.mxu0 0
      %838 = vmatpush2.bf16.msra.mxu0 0
      %839 = vmatprep.subr.bf16.mxu0 0
      %840 = vmatpush2.bf16.msra.mxu0 0
      %841 = vmatprep.subr.bf16.mxu0 0
      %842 = vmatpush2.bf16.msra.mxu0 0
      %843 = vmatprep.subr.bf16.mxu0 0
      %844 = vmatpush2.bf16.msra.mxu0 0
      %845 = vmatprep.subr.bf16.mxu0 0
      %846 = vmatpush2.bf16.msra.mxu0 0
      %847 = vmatprep.subr.bf16.mxu0 0
      %848 = vmatpush2.bf16.msra.mxu0 0
      %849 = vmatprep.subr.bf16.mxu0 0
      %850 = vmatpush2.bf16.msra.mxu0 0
      %851 = vmatprep.mubr.bf16.mxu0 0
      %852 = vmatmul.mubr.bf16.gmra.mxu0 %v817
      %v853 = vpop.f32.mrf.mxu0
      %v854 = vadd.f32 0.0, %v853
      %v855 = vpop.f32.mrf.mxu0
      %v856 = vadd.f32 0.0, %v855
      %v857 = vpop.f32.mrf.mxu0
      %v858 = vadd.f32 0.0, %v857
      %v859 = vpop.f32.mrf.mxu0
      %v860 = vadd.f32 0.0, %v859
      %861 = vdwg.mxu0
      %862 = vmatprep.subr.bf16.mxu0 0
      %863 = vmatpush1.bf16.msra.mxu0 0
      %864 = vmatprep.subr.bf16.mxu0 0
      %865 = vmatpush1.bf16.msra.mxu0 0
      %866 = vmatprep.subr.bf16.mxu0 0
      %867 = vmatpush1.bf16.msra.mxu0 0
      %868 = vmatprep.subr.bf16.mxu0 0
      %869 = vmatpush1.bf16.msra.mxu0 0
      %870 = vmatprep.subr.bf16.mxu0 0
      %871 = vmatpush1.bf16.msra.mxu0 0
      %872 = vmatprep.subr.bf16.mxu0 0
      %873 = vmatpush1.bf16.msra.mxu0 0
      %874 = vmatprep.subr.bf16.mxu0 0
      %875 = vmatpush1.bf16.msra.mxu0 %v808
      %876 = vmatprep.subr.bf16.mxu0 0
      %877 = vmatpush1.bf16.msra.mxu0 %v805
      %878 = vmatprep.subr.bf16.mxu0 0
      %879 = vmatpush2.bf16.msra.mxu0 0
      %880 = vmatprep.subr.bf16.mxu0 0
      %881 = vmatpush2.bf16.msra.mxu0 0
      %882 = vmatprep.subr.bf16.mxu0 0
      %883 = vmatpush2.bf16.msra.mxu0 0
      %884 = vmatprep.subr.bf16.mxu0 0
      %885 = vmatpush2.bf16.msra.mxu0 0
      %886 = vmatprep.subr.bf16.mxu0 0
      %887 = vmatpush2.bf16.msra.mxu0 0
      %888 = vmatprep.subr.bf16.mxu0 0
      %889 = vmatpush2.bf16.msra.mxu0 0
      %890 = vmatprep.subr.bf16.mxu0 0
      %891 = vmatpush2.bf16.msra.mxu0 0
      %892 = vmatprep.subr.bf16.mxu0 0
      %893 = vmatpush2.bf16.msra.mxu0 0
      %894 = vmatprep.mubr.bf16.mxu0 0
      %895 = vmatmul.mubr.bf16.gmra.mxu0 %v817
      %v896 = vpop.f32.mrf.mxu0
      %v897 = vpop.f32.mrf.mxu0
      %v898 = vpop.f32.mrf.mxu0
      %v899 = vadd.f32 0.0, %v898
      %v900 = vpop.f32.mrf.mxu0
      %901 = vdwg.mxu0
      %v904 = vrot.slane %v854, 6
      %v905 = vrot.slane %v858, 6
      %v906 = vsel %vm528, %v904, %v905
      %907 = vrot.lane.b32.xlu0 %v904, 64
      %v908 = vpop.permute.xlu0 %907
      %909 = vrot.lane.b32.xlu0 %v906, 64
      %v910 = vpop.permute.xlu0 %909
      %v915 = vrot.slane %v856, 4
      %v916 = vrot.slane %v860, 4
      %v917 = vsel %vm534, %v915, %v916
      %920 = vrot.lane.b32.xlu0 %v916, 64
      %v921 = vpop.permute.xlu0 %920
      %v924 = vrot.slane %v899, 2
      %v926 = vsel %vm528, %v858, %v908
      %v927 = vsel %vm534, %v910, %v915
      %v928 = vsel %vm540, %v917, %v921
      %v929 = vld [vmem:[%s4] sm:$0xf]
      %v930 = vld [vmem:[%s4 + $0x4] sm:$0xf]
      %v931 = vld [vmem:[%s4 + $0x8] sm:$0xf]
      %v932 = vld [vmem:[%s4 + $0xc] sm:$0xf]
      %v933 = vld [vmem:[%s4 + $0x10] sm:$0xf]
      %v934 = vld [vmem:[%s4 + $0x14] sm:$0xf]
      %v935 = vld [vmem:[%s4 + $0x18] sm:$0x1]
      %v936 = vpack.c.bf16 %v926, %v854
      %v937 = vpack.c.bf16 %v928, %v927
      %v938 = vpack.c.bf16 %v924, %v924
      %v939 = vld [vmem:[%s5] sm:$0x1]
      %v941 = vlaneseq
      %v942 = vshrl.u32 %v941, 7
      %v943 = vsub.s32 0, %v942
      %v944 = vrot.slane %v939, %v943
      %v953 = vunpack.c.l.b16 %v929
      %v954 = vunpack.c.l.b16 %v930
      %v955 = vunpack.c.l.b16 %v931
      %v956 = vunpack.c.l.b16 %v932
      %v957 = vunpack.c.l.b16 %v933
      %v958 = vunpack.c.l.b16 %v934
      %v959 = vunpack.c.l.b16 %v935
      %v960 = vpack.c.b16 %v954, %v953
      %v961 = vpack.c.b16 %v956, %v955
      %v962 = vpack.c.b16 %v958, %v957
      %v963 = vpack.c.b16 %v959, %v959
      %vm964 = vcmask 277504
      %v966 = vsel %vm964, %v960, 0
      %v969 = vsel %vm964, %v961, 0
      %v972 = vsel %vm964, %v962, 0
      %v975 = vsel %vm964, %v963, 0
      %v978 = vsel %vm525, %v938, 0
      %980 = vmatprep.subr.bf16.mxu0 0
      %981 = vmatpush1.bf16.msra.mxu0 0
      %982 = vmatprep.subr.bf16.mxu0 0
      %983 = vmatpush1.bf16.msra.mxu0 0
      %984 = vmatprep.subr.bf16.mxu0 0
      %985 = vmatpush1.bf16.msra.mxu0 0
      %986 = vmatprep.subr.bf16.mxu0 0
      %987 = vmatpush1.bf16.msra.mxu0 0
      %988 = vmatprep.subr.bf16.mxu0 0
      %989 = vmatpush1.bf16.msra.mxu0 0
      %990 = vmatprep.subr.bf16.mxu0 0
      %991 = vmatpush1.bf16.msra.mxu0 %v978
      %992 = vmatprep.subr.bf16.mxu0 0
      %993 = vmatpush1.bf16.msra.mxu0 %v937
      %994 = vmatprep.subr.bf16.mxu0 0
      %995 = vmatpush1.bf16.msra.mxu0 %v936
      %996 = vmatprep.subr.bf16.mxu0 0
      %997 = vmatpush2.bf16.msra.mxu0 0
      %998 = vmatprep.subr.bf16.mxu0 0
      %999 = vmatpush2.bf16.msra.mxu0 0
      %1000 = vmatprep.subr.bf16.mxu0 0
      %1001 = vmatpush2.bf16.msra.mxu0 0
      %1002 = vmatprep.subr.bf16.mxu0 0
      %1003 = vmatpush2.bf16.msra.mxu0 0
      %1004 = vmatprep.subr.bf16.mxu0 0
      %1005 = vmatpush2.bf16.msra.mxu0 0
      %1006 = vmatprep.subr.bf16.mxu0 0
      %1007 = vmatpush2.bf16.msra.mxu0 0
      %1008 = vmatprep.subr.bf16.mxu0 0
      %1009 = vmatpush2.bf16.msra.mxu0 0
      %1010 = vmatprep.subr.bf16.mxu0 0
      %1011 = vmatpush2.bf16.msra.mxu0 0
      %1012 = vmatprep.mubr.bf16.mxu0 0
      %1013 = vmatmul.mubr.bf16.gmra.mxu0 %v966
      %v1014 = vpop.f32.mrf.mxu0
      %v1015 = vadd.f32 %v944, %v1014
      %v1016 = vpop.f32.mrf.mxu0
      %v1017 = vpop.f32.mrf.mxu0
      %v1018 = vadd.f32 %v944, %v1017
      %v1019 = vpop.f32.mrf.mxu0
      %1020 = vmatprep.mubr.bf16.mxu0 0
      %1021 = vmatmul.mubr.bf16.gmra.mxu0 %v969
      %v1022 = vpop.f32.mrf.mxu0
      %v1023 = vadd.f32 %v944, %v1022
      %v1024 = vpop.f32.mrf.mxu0
      %v1025 = vpop.f32.mrf.mxu0
      %v1026 = vadd.f32 %v944, %v1025
      %v1027 = vpop.f32.mrf.mxu0
      %1028 = vmatprep.mubr.bf16.mxu0 0
      %1029 = vmatmul.mubr.bf16.gmra.mxu0 %v972
      %v1030 = vpop.f32.mrf.mxu0
      %v1031 = vadd.f32 %v944, %v1030
      %v1032 = vpop.f32.mrf.mxu0
      %v1033 = vpop.f32.mrf.mxu0
      %v1034 = vadd.f32 %v944, %v1033
      %v1035 = vpop.f32.mrf.mxu0
      %1036 = vmatprep.mubr.bf16.mxu0 0
      %1037 = vmatmul.mubr.bf16.gmra.mxu0 %v975
      %v1038 = vpop.f32.mrf.mxu0
      %v1039 = vadd.f32 %v944, %v1038
      %v1040 = vpop.f32.mrf.mxu0
      %v1041 = vpop.f32.mrf.mxu0
      %v1042 = vpop.f32.mrf.mxu0
      %1043 = vdwg.mxu0
      %v1044 = vmax.f32 %v1015, 0.0
      %v1045 = vmax.f32 %v1018, 0.0
      %v1046 = vmax.f32 %v1023, 0.0
      %v1047 = vmax.f32 %v1026, 0.0
      %v1048 = vmax.f32 %v1031, 0.0
      %v1049 = vmax.f32 %v1034, 0.0
      %v1050 = vmax.f32 %v1039, 0.0
      %v1051 = vpack.c.bf16 %v1045, %v1044
      %v1052 = vpack.c.bf16 %v1047, %v1046
      %v1053 = vpack.c.bf16 %v1049, %v1048
      %v1054 = vpack.c.bf16 %v1050, %v1050
      %v1055 = vld [vmem:[%s6] sm:$0xf]
      %v1056 = vld [vmem:[%s6 + $0x4] sm:$0xf]
      %v1057 = vld [vmem:[%s6 + $0x8] sm:$0xf]
      %v1058 = vld [vmem:[%s6 + $0xc] sm:$0xf]
      %v1059 = vld [vmem:[%s6 + $0x10] sm:$0xf]
      %v1060 = vld [vmem:[%s6 + $0x14] sm:$0xf]
      %v1061 = vld [vmem:[%s6 + $0x18] sm:$0xf]
      %v1062 = vld [vmem:[%s6 + $0x1c] sm:$0xf]
      %v1063 = vld [vmem:[%s7] sm:$0x1]
      %v1065 = vlaneseq
      %v1066 = vshrl.u32 %v1065, 7
      %v1067 = vsub.s32 0, %v1066
      %v1068 = vrot.slane %v1063, %v1067
      %v1078 = vunpack.c.l.b16 %v1055
      %v1079 = vunpack.c.l.b16 %v1056
      %v1080 = vunpack.c.l.b16 %v1057
      %v1081 = vunpack.c.l.b16 %v1058
      %v1082 = vunpack.c.l.b16 %v1059
      %v1083 = vunpack.c.l.b16 %v1060
      %v1084 = vunpack.c.l.b16 %v1061
      %v1085 = vunpack.c.l.b16 %v1062
      %v1086 = vpack.c.b16 %v1079, %v1078
      %v1087 = vpack.c.b16 %v1081, %v1080
      %v1088 = vpack.c.b16 %v1083, %v1082
      %v1089 = vpack.c.b16 %v1085, %v1084
      %vm1094 = vcmask 523264
      %v1096 = vsel %vm1094, %v1051, 0
      %v1099 = vsel %vm1094, %v1052, 0
      %v1102 = vsel %vm1094, %v1053, 0
      %v1105 = vsel %vm1094, %v1054, 0
      %1107 = vmatprep.subr.bf16.mxu0 0
      %1108 = vmatpush1.bf16.msra.mxu0 0
      %1109 = vmatprep.subr.bf16.mxu0 0
      %1110 = vmatpush1.bf16.msra.mxu0 0
      %1111 = vmatprep.subr.bf16.mxu0 0
      %1112 = vmatpush1.bf16.msra.mxu0 0
      %1113 = vmatprep.subr.bf16.mxu0 0
      %1114 = vmatpush1.bf16.msra.mxu0 0
      %1115 = vmatprep.subr.bf16.mxu0 0
      %1116 = vmatpush1.bf16.msra.mxu0 %v1089
      %1117 = vmatprep.subr.bf16.mxu0 0
      %1118 = vmatpush1.bf16.msra.mxu0 %v1088
      %1119 = vmatprep.subr.bf16.mxu0 0
      %1120 = vmatpush1.bf16.msra.mxu0 %v1087
      %1121 = vmatprep.subr.bf16.mxu0 0
      %1122 = vmatpush1.bf16.msra.mxu0 %v1086
      %1123 = vmatprep.subr.bf16.mxu0 0
      %1124 = vmatpush2.bf16.msra.mxu0 0
      %1125 = vmatprep.subr.bf16.mxu0 0
      %1126 = vmatpush2.bf16.msra.mxu0 0
      %1127 = vmatprep.subr.bf16.mxu0 0
      %1128 = vmatpush2.bf16.msra.mxu0 0
      %1129 = vmatprep.subr.bf16.mxu0 0
      %1130 = vmatpush2.bf16.msra.mxu0 0
      %1131 = vmatprep.subr.bf16.mxu0 0
      %1132 = vmatpush2.bf16.msra.mxu0 0
      %1133 = vmatprep.subr.bf16.mxu0 0
      %1134 = vmatpush2.bf16.msra.mxu0 0
      %1135 = vmatprep.subr.bf16.mxu0 0
      %1136 = vmatpush2.bf16.msra.mxu0 0
      %1137 = vmatprep.subr.bf16.mxu0 0
      %1138 = vmatpush2.bf16.msra.mxu0 0
      %1139 = vmatprep.mubr.bf16.mxu0 0
      %1140 = vmatmul.mubr.bf16.gmra.mxu0 %v1096
      %v1141 = vpop.f32.mrf.mxu0
      %v1142 = vadd.f32 %v1068, %v1141
      %v1143 = vpop.f32.mrf.mxu0
      %v1144 = vpop.f32.mrf.mxu0
      %v1145 = vadd.f32 %v1068, %v1144
      %v1146 = vpop.f32.mrf.mxu0
      %1147 = vmatprep.mubr.bf16.mxu0 0
      %1148 = vmatmul.mubr.bf16.gmra.mxu0 %v1099
      %v1149 = vpop.f32.mrf.mxu0
      %v1150 = vadd.f32 %v1068, %v1149
      %v1151 = vpop.f32.mrf.mxu0
      %v1152 = vpop.f32.mrf.mxu0
      %v1153 = vadd.f32 %v1068, %v1152
      %v1154 = vpop.f32.mrf.mxu0
      %1155 = vmatprep.mubr.bf16.mxu0 0
      %1156 = vmatmul.mubr.bf16.gmra.mxu0 %v1102
      %v1157 = vpop.f32.mrf.mxu0
      %v1158 = vadd.f32 %v1068, %v1157
      %v1159 = vpop.f32.mrf.mxu0
      %v1160 = vpop.f32.mrf.mxu0
      %v1161 = vadd.f32 %v1068, %v1160
      %v1162 = vpop.f32.mrf.mxu0
      %1163 = vmatprep.mubr.bf16.mxu0 0
      %1164 = vmatmul.mubr.bf16.gmra.mxu0 %v1105
      %v1165 = vpop.f32.mrf.mxu0
      %v1166 = vadd.f32 %v1068, %v1165
      %v1167 = vpop.f32.mrf.mxu0
      %v1168 = vpop.f32.mrf.mxu0
      %v1169 = vpop.f32.mrf.mxu0
      %1170 = vdwg.mxu0
      %v1171 = vmax.f32 %v1142, 0.0
      %v1172 = vmax.f32 %v1145, 0.0
      %v1173 = vmax.f32 %v1150, 0.0
      %v1174 = vmax.f32 %v1153, 0.0
      %v1175 = vmax.f32 %v1158, 0.0
      %v1176 = vmax.f32 %v1161, 0.0
      %v1177 = vmax.f32 %v1166, 0.0
      %v1178 = vld [vmem:[%s8] sm:$0x1]
      %v1179 = vpack.c.bf16 %v1172, %v1171
      %v1180 = vpack.c.bf16 %v1174, %v1173
      %v1181 = vpack.c.bf16 %v1176, %v1175
      %v1182 = vpack.c.bf16 %v1177, %v1177
      %vm1183 = vcmask 408576
      %v1185 = vsel %vm1183, %v1178, 0
      %v1188 = vsel %vm525, %v1182, 0
      %1190 = vmatprep.subr.bf16.mxu0 0
      %1191 = vmatpush1.bf16.msra.mxu0 0
      %1192 = vmatprep.subr.bf16.mxu0 0
      %1193 = vmatpush1.bf16.msra.mxu0 0
      %1194 = vmatprep.subr.bf16.mxu0 0
      %1195 = vmatpush1.bf16.msra.mxu0 0
      %1196 = vmatprep.subr.bf16.mxu0 0
      %1197 = vmatpush1.bf16.msra.mxu0 0
      %1198 = vmatprep.subr.bf16.mxu0 0
      %1199 = vmatpush1.bf16.msra.mxu0 %v1188
      %1200 = vmatprep.subr.bf16.mxu0 0
      %1201 = vmatpush1.bf16.msra.mxu0 %v1181
      %1202 = vmatprep.subr.bf16.mxu0 0
      %1203 = vmatpush1.bf16.msra.mxu0 %v1180
      %1204 = vmatprep.subr.bf16.mxu0 0
      %1205 = vmatpush1.bf16.msra.mxu0 %v1179
      %1206 = vmatprep.subr.bf16.mxu0 0
      %1207 = vmatpush2.bf16.msra.mxu0 0
      %1208 = vmatprep.subr.bf16.mxu0 0
      %1209 = vmatpush2.bf16.msra.mxu0 0
      %1210 = vmatprep.subr.bf16.mxu0 0
      %1211 = vmatpush2.bf16.msra.mxu0 0
      %1212 = vmatprep.subr.bf16.mxu0 0
      %1213 = vmatpush2.bf16.msra.mxu0 0
      %1214 = vmatprep.subr.bf16.mxu0 0
      %1215 = vmatpush2.bf16.msra.mxu0 0
      %1216 = vmatprep.subr.bf16.mxu0 0
      %1217 = vmatpush2.bf16.msra.mxu0 0
      %1218 = vmatprep.subr.bf16.mxu0 0
      %1219 = vmatpush2.bf16.msra.mxu0 0
      %1220 = vmatprep.subr.bf16.mxu0 0
      %1221 = vmatpush2.bf16.msra.mxu0 0
      %1222 = vmatprep.mubr.bf16.mxu0 0
      %1223 = vmatmul.mubr.bf16.gmra.mxu0 %v1185
      %v1224 = vpop.f32.mrf.mxu0
      %v1225 = vadd.f32 0.0, %v1224
      %v1226 = vpop.f32.mrf.mxu0
      %v1227 = vpop.f32.mrf.mxu0
      %v1228 = vpop.f32.mrf.mxu0
      %1229 = vdwg.mxu0
      %v1230 = vpack.c.bf16 %v1225, %v1225
      %v1231 = vld [vmem:[%s9] sm:$0xf]
      %v1232 = vld [vmem:[%s9 + $0x4] sm:$0xf]
      %v1233 = vld [vmem:[%s9 + $0x8] sm:$0xf]
      %v1234 = vld [vmem:[%s9 + $0xc] sm:$0xf]
      %v1235 = vld [vmem:[%s9 + $0x10] sm:$0xf]
      %v1236 = vld [vmem:[%s9 + $0x14] sm:$0xf]
      %v1237 = vld [vmem:[%s9 + $0x18] sm:$0xf]
      %v1238 = vld [vmem:[%s9 + $0x1c] sm:$0xf]
      %v1239 = vld [vmem:[%s10] sm:$0x1]
      %v1241 = vlaneseq
      %v1242 = vshrl.u32 %v1241, 7
      %v1243 = vsub.s32 0, %v1242
      %v1244 = vrot.slane %v1239, %v1243
      %v1254 = vunpack.c.l.b16 %v1231
      %v1255 = vunpack.c.l.b16 %v1232
      %v1256 = vunpack.c.l.b16 %v1233
      %v1257 = vunpack.c.l.b16 %v1234
      %v1258 = vunpack.c.l.b16 %v1235
      %v1259 = vunpack.c.l.b16 %v1236
      %v1260 = vunpack.c.l.b16 %v1237
      %v1261 = vunpack.c.l.b16 %v1238
      %v1262 = vpack.c.b16 %v1255, %v1254
      %v1263 = vpack.c.b16 %v1257, %v1256
      %v1264 = vpack.c.b16 %v1259, %v1258
      %v1265 = vpack.c.b16 %v1261, %v1260
      %v1271 = vsel %vm1094, %v1230, 0
      %1273 = vmatprep.subr.bf16.mxu0 0
      %1274 = vmatpush1.bf16.msra.mxu0 0
      %1275 = vmatprep.subr.bf16.mxu0 0
      %1276 = vmatpush1.bf16.msra.mxu0 0
      %1277 = vmatprep.subr.bf16.mxu0 0
      %1278 = vmatpush1.bf16.msra.mxu0 0
      %1279 = vmatprep.subr.bf16.mxu0 0
      %1280 = vmatpush1.bf16.msra.mxu0 0
      %1281 = vmatprep.subr.bf16.mxu0 0
      %1282 = vmatpush1.bf16.msra.mxu0 %v1265
      %1283 = vmatprep.subr.bf16.mxu0 0
      %1284 = vmatpush1.bf16.msra.mxu0 %v1264
      %1285 = vmatprep.subr.bf16.mxu0 0
      %1286 = vmatpush1.bf16.msra.mxu0 %v1263
      %1287 = vmatprep.subr.bf16.mxu0 0
      %1288 = vmatpush1.bf16.msra.mxu0 %v1262
      %1289 = vmatprep.subr.bf16.mxu0 0
      %1290 = vmatpush2.bf16.msra.mxu0 0
      %1291 = vmatprep.subr.bf16.mxu0 0
      %1292 = vmatpush2.bf16.msra.mxu0 0
      %1293 = vmatprep.subr.bf16.mxu0 0
      %1294 = vmatpush2.bf16.msra.mxu0 0
      %1295 = vmatprep.subr.bf16.mxu0 0
      %1296 = vmatpush2.bf16.msra.mxu0 0
      %1297 = vmatprep.subr.bf16.mxu0 0
      %1298 = vmatpush2.bf16.msra.mxu0 0
      %1299 = vmatprep.subr.bf16.mxu0 0
      %1300 = vmatpush2.bf16.msra.mxu0 0
      %1301 = vmatprep.subr.bf16.mxu0 0
      %1302 = vmatpush2.bf16.msra.mxu0 0
      %1303 = vmatprep.subr.bf16.mxu0 0
      %1304 = vmatpush2.bf16.msra.mxu0 0
      %1305 = vmatprep.mubr.bf16.mxu0 0
      %1306 = vmatmul.mubr.bf16.gmra.mxu0 %v1271
      %v1307 = vpop.f32.mrf.mxu0
      %v1308 = vadd.f32 %v1244, %v1307
      %v1309 = vpop.f32.mrf.mxu0
      %v1310 = vpop.f32.mrf.mxu0
      %v1311 = vpop.f32.mrf.mxu0
      %1312 = vdwg.mxu0
      %v1313 = vmax.f32 %v1308, 0.0
      %v1314 = vld [vmem:[%s11] sm:$0x3]
      %v1315 = vmul.f32 %v1313, %v1314
      %v1316 = vpack.c.bf16 %v1315, %v1315
      %v1317 = vld [vmem:[%s12] sm:$0xf]
      %v1318 = vld [vmem:[%s12 + $0x4] sm:$0xf]
      %v1319 = vld [vmem:[%s12 + $0x8] sm:$0xf]
      %v1320 = vld [vmem:[%s12 + $0xc] sm:$0xf]
      %v1321 = vld [vmem:[%s12 + $0x10] sm:$0xf]
      %v1322 = vld [vmem:[%s12 + $0x14] sm:$0xf]
      %v1323 = vld [vmem:[%s12 + $0x18] sm:$0xf]
      %v1324 = vld [vmem:[%s12 + $0x1c] sm:$0xf]
      %v1333 = vunpack.c.l.b16 %v1317
      %v1334 = vunpack.c.l.b16 %v1318
      %v1335 = vunpack.c.l.b16 %v1319
      %v1336 = vunpack.c.l.b16 %v1320
      %v1337 = vunpack.c.l.b16 %v1321
      %v1338 = vunpack.c.l.b16 %v1322
      %v1339 = vunpack.c.l.b16 %v1323
      %v1340 = vunpack.c.l.b16 %v1324
      %v1341 = vpack.c.b16 %v1334, %v1333
      %v1342 = vpack.c.b16 %v1336, %v1335
      %v1343 = vpack.c.b16 %v1338, %v1337
      %v1344 = vpack.c.b16 %v1340, %v1339
      %v1350 = vsel %vm1094, %v1316, 0
      %1352 = vmatprep.subr.bf16.mxu0 0
      %1353 = vmatpush1.bf16.msra.mxu0 0
      %1354 = vmatprep.subr.bf16.mxu0 0
      %1355 = vmatpush1.bf16.msra.mxu0 0
      %1356 = vmatprep.subr.bf16.mxu0 0
      %1357 = vmatpush1.bf16.msra.mxu0 0
      %1358 = vmatprep.subr.bf16.mxu0 0
      %1359 = vmatpush1.bf16.msra.mxu0 0
      %1360 = vmatprep.subr.bf16.mxu0 0
      %1361 = vmatpush1.bf16.msra.mxu0 %v1344
      %1362 = vmatprep.subr.bf16.mxu0 0
      %1363 = vmatpush1.bf16.msra.mxu0 %v1343
      %1364 = vmatprep.subr.bf16.mxu0 0
      %1365 = vmatpush1.bf16.msra.mxu0 %v1342
      %1366 = vmatprep.subr.bf16.mxu0 0
      %1367 = vmatpush1.bf16.msra.mxu0 %v1341
      %1368 = vmatprep.subr.bf16.mxu0 0
      %1369 = vmatpush2.bf16.msra.mxu0 0
      %1370 = vmatprep.subr.bf16.mxu0 0
      %1371 = vmatpush2.bf16.msra.mxu0 0
      %1372 = vmatprep.subr.bf16.mxu0 0
      %1373 = vmatpush2.bf16.msra.mxu0 0
      %1374 = vmatprep.subr.bf16.mxu0 0
      %1375 = vmatpush2.bf16.msra.mxu0 0
      %1376 = vmatprep.subr.bf16.mxu0 0
      %1377 = vmatpush2.bf16.msra.mxu0 0
      %1378 = vmatprep.subr.bf16.mxu0 0
      %1379 = vmatpush2.bf16.msra.mxu0 0
      %1380 = vmatprep.subr.bf16.mxu0 0
      %1381 = vmatpush2.bf16.msra.mxu0 0
      %1382 = vmatprep.subr.bf16.mxu0 0
      %1383 = vmatpush2.bf16.msra.mxu0 0
      %1384 = vmatprep.mubr.bf16.mxu0 0
      %1385 = vmatmul.mubr.bf16.gmra.mxu0 %v1350
      %v1386 = vpop.f32.mrf.mxu0
      %v1387 = vadd.f32 0.0, %v1386
      %v1388 = vpop.f32.mrf.mxu0
      %v1389 = vpop.f32.mrf.mxu0
      %v1390 = vpop.f32.mrf.mxu0
      %1391 = vdwg.mxu0
      %v1393 = vrot.slane %v1387, 1
      %v1395 = vadd.f32 %v1387, %v1393
      %v1396 = vld [vmem:[%s13] sm:$0x1]
      %v1397 = vadd.f32 %v1395, %v1396
      %v1398 = vlaneseq
      %v1399 = vshrl.u32 %v1398, 7
      %v1400 = vsub.s32 0, %v1399
      %v1401 = vrot.slane %v1397, %v1400
      %1402 = vst [vmem:[%s425] sm:$0xff] %v1401
      %p1403 = scmp.lt.s32.totalorder %s31, 1
      %s1404 = scalar_select %p1403, %s31, 1
      %s1405 = smul.addr %s1404, 8
      %s1406 = scalar_lea.vmem %s14, %s1405
      // Predicated region
      $region73: #{eq1to2_set_forward.1} parent=71 // pred_check
        %p1407 = pneg %p322
      $region74: #{eq1to2_set_forward.1} parent=71 // pred_check_branch
        %1409 = sbr.rel (%p1407) target = $region76
      $region75: #{eq1to2_set_forward.1} parent=71 // pred_region
        _
      $region76: #{eq1to2_set_forward.1} parent=71 // pred_fallthru
        _
    $region72: #{eq1to2_set_forward.1} parent=5 // pred_fallthru
      _
    %p1410 = scmp.le.s32.totalorder 2, %s26
    // Predicated region
    $region77: #{eq1to2_set_forward.1} parent=5 // pred_check
      %p1411 = pneg %p1410
    $region78: #{eq1to2_set_forward.1} parent=5 // pred_check_branch
      %1413 = sbr.rel (%p1411) target = $region80
    $region79: #{eq1to2_set_forward.1} parent=5 // pred_region
      %s1414 = ssub.s32 %s26, 2
      // Predicated region
      $region81: #{eq1to2_set_forward.1} parent=79 // pred_check
        %p1415 = pneg %p328
      $region82: #{eq1to2_set_forward.1} parent=79 // pred_check_branch
        %1417 = sbr.rel (%p1415) target = $region84
      $region83: #{eq1to2_set_forward.1} parent=79 // pred_region
        %p1418 = scmp.lt.s32.totalorder %s32, 1
        %s1419 = scalar_select %p1418, %s32, 1
        %s1420 = smul.addr %s1419, 8
        %s1421 = scalar_lea.vmem %s14, %s1420
      $region84: #{eq1to2_set_forward.1} parent=79 // pred_fallthru
        _
    $region80: #{eq1to2_set_forward.1} parent=5 // pred_fallthru
      _
  $region6: #{eq1to2_set_forward.1} parent=0 // loop_footer
    %s30 = sadd.s32 1, %s26
  $region7: #{eq1to2_set_forward.1} parent=0 // loop_footer_branch
    %25 = sbr.rel target = $region3
  $region8: #{eq1to2_set_forward.1} parent=0 // loop_exit
    _

</llo_original>
